<compile_context>
chip_gen: v5e
topology: v5e:2x2
jax: 0.10.0
libtpu: 0.0.40
codegen_flags: <defaults>
</compile_context>

<pallas_src>
import functools
import math

import numpy as np
import jax
import jax.numpy as jnp
from jax import lax
from jax.experimental import pallas as pl
from jax.experimental.pallas import tpu as pltpu  # noqa: F401

# ---------------------------- configuration ---------------------------------
HIDDEN = 32
HEAD_DIM = 16
NUM_HEADS = 2
NUM_V_HEADS = 2                              # == NUM_HEADS (GVA path still handled)
EXPAND_V = 2.0
CONV_SIZE = 4
HEAD_K_DIM = HEAD_DIM                        # 16
HEAD_V_DIM = int(HEAD_DIM * EXPAND_V)        # 32
KEY_DIM = NUM_HEADS * HEAD_K_DIM             # 32
VALUE_DIM = NUM_V_HEADS * HEAD_V_DIM         # 64
NORM_EPS = 1e-5
L2_EPS = 1e-6
B, T = 2, 8
BH = B * NUM_V_HEADS                         # 4 packed (batch, v-head) pairs
QKV_DIM = 2 * KEY_DIM + VALUE_DIM            # 128 (q|k|v per batch block)
LANES = BH * HEAD_V_DIM                      # 128 packed recurrence lanes
KDIM_P = BH * HEAD_K_DIM                     # 64 packed q/k lanes
ABCOLS = B * 2 * NUM_V_HEADS                 # 8  (a|b per batch block)
SCALE = HEAD_K_DIM ** -0.5

# fused projection column layout (lane-padded to 512)
PROJ_QKV = 0                                 # 256 lanes: q|k|v, block-diag over batch
PROJ_G = B * QKV_DIM                         # 256: gate projection (128 lanes)
PROJ_AB = PROJ_G + LANES                     # 384: a|b projection (8 lanes)
W_COLS = 512

# slab_c (256-lane constant slab) row offsets
C_HEAD = 0                                   # 8 rows: conv taps(4) | negA | dtb | maska | 0
C_SHIFT = 8                                  # 24 rows: causal time-shift matrices (lanes 0..T)
C_P = C_SHIFT + (CONV_SIZE - 1) * T          # 32 : repack [v(128) | q(64) | k(64)]   (256 rows)
C_EXPGB = C_P + B * QKV_DIM                  # 288: [expg | expb]                      (8 rows)
C_ROWS = C_EXPGB + ABCOLS                    # 296

# slab_b (128-lane constant slab) row offsets
B_YSEL = 0                                   # 64 rows : packed-k block -> packed-v block
B_XR = B_YSEL + KDIM_P                       # 64  : xsel (lanes 0..63) | rep16 (lanes 64..71)
B_RED = B_XR + T * HEAD_K_DIM                # 192 : SCALE * per-t sublane-group reduction (8)
B_G128 = B_RED + T                           # 200 : q/k L2-norm 16-lane group sums (128 rows)
B_GV = B_G128 + 2 * KDIM_P                   # 328 : per-v-head mean-of-squares (128 rows)
B_WO = B_GV + LANES                          # 456 : norm-folded, zero-padded Wo (128 rows)
B_ROWS = B_WO + B * VALUE_DIM                # 584


# -------------------- host-precomputed structural constants ------------------
def _build_static_slabs():
    f32 = np.float32
    l = np.arange(LANES)
    b_l = l // (NUM_V_HEADS * HEAD_V_DIM)
    h_l = (l // HEAD_V_DIM) % NUM_V_HEADS
    d_l = l % HEAD_V_DIM

    c = np.arange(KDIM_P)
    b_k = c // (NUM_V_HEADS * HEAD_K_DIM)
    h_k = (c // HEAD_K_DIM) % NUM_V_HEADS
    d_k = c % HEAD_K_DIM
    src_head = h_k // (NUM_V_HEADS // NUM_HEADS)          # GVA head expansion

    # ---------------- 256-lane slab (static part) ----------------
    slab_c = np.zeros((C_ROWS, 2 * LANES), f32)

    # decay/beta column mask (row 6 of the head block)
    slab_c[6, 0:ABCOLS] = (np.arange(ABCOLS) % (2 * NUM_V_HEADS) < NUM_V_HEADS).astype(f32)

    # stacked causal time-shift matrices (shift s = 1..K-1), lanes 0..T-1
    for s in range(1, CONV_SIZE):
        for t in range(s, T):
            slab_c[C_SHIFT + (s - 1) * T + t, t - s] = 1.0

    # repack matrix P: columns [v(128) | q(64) | k(64)]
    slab_c[C_P + b_l * QKV_DIM + 2 * KEY_DIM + h_l * HEAD_V_DIM + d_l, l] = 1.0
    slab_c[C_P + b_k * QKV_DIM + src_head * HEAD_K_DIM + d_k, LANES + c] = 1.0
    slab_c[C_P + b_k * QKV_DIM + KEY_DIM + src_head * HEAD_K_DIM + d_k,
           LANES + KDIM_P + c] = 1.0

    # merged [expg | expb] lane-expansion matrix
    cols = np.arange(ABCOLS)
    expg = (cols[:, None] == (b_l * 2 * NUM_V_HEADS + h_l)[None, :]).astype(f32)
    expb = (cols[:, None] == (b_l * 2 * NUM_V_HEADS + NUM_V_HEADS + h_l)[None, :]).astype(f32)
    slab_c[C_EXPGB:C_EXPGB + ABCOLS, 0:LANES] = expg
    slab_c[C_EXPGB:C_EXPGB + ABCOLS, LANES:2 * LANES] = expb

    # ---------------- 128-lane slab (static part) ----------------
    slab_b = np.zeros((B_ROWS, LANES), f32)

    # ysel: packed-k 16-lane block -> packed-v 32-lane block
    slab_b[B_YSEL:B_YSEL + KDIM_P, :] = (
        c[:, None] // HEAD_K_DIM == l[None, :] // HEAD_V_DIM).astype(f32)

    # xsel (lanes 0..63) and rep16 (lanes 64..64+T) share one 128-row block
    r = np.arange(T * HEAD_K_DIM)
    slab_b[B_XR:B_XR + T * HEAD_K_DIM, 0:KDIM_P] = (
        (c[None, :] % HEAD_K_DIM) == (r[:, None] % HEAD_K_DIM)).astype(f32)
    slab_b[B_XR:B_XR + T * HEAD_K_DIM, KDIM_P:KDIM_P + T] = (
        np.arange(T)[None, :] == (r[:, None] // HEAD_K_DIM)).astype(f32)

    # scaled per-t sublane-group reduction: red8 = SCALE * rep16.T
    slab_b[B_RED:B_RED + T, :] = SCALE * (
        (r[None, :] // HEAD_K_DIM) == np.arange(T)[:, None]).astype(f32)

    # per 16-lane group sums for q/k L2 norm (q lanes 0..63, k lanes 64..127)
    qk = np.arange(2 * KDIM_P)
    slab_b[B_G128:B_G128 + 2 * KDIM_P, :] = (
        qk[:, None] // HEAD_K_DIM == qk[None, :] // HEAD_K_DIM).astype(f32)

    # per v-head (32-lane) mean-of-squares for gated RMSNorm
    slab_b[B_GV:B_GV + LANES, :] = (
        l[:, None] // HEAD_V_DIM == l[None, :] // HEAD_V_DIM).astype(f32) / HEAD_V_DIM

    return slab_c, slab_b


_SLAB_C_STATIC, _SLAB_B_STATIC = _build_static_slabs()


# ------------------------------ fused kernel ---------------------------------
def _gdn_fused_kernel(x_ref, w_ref, cslab_ref, bslab_ref, out_ref):
    f32 = jnp.float32
    mm = functools.partial(jnp.dot, preferred_element_type=f32)

    def softplus(z):  # == jax.nn.softplus, numerically stable
        return jnp.maximum(z, 0.0) + jnp.log1p(jnp.exp(-jnp.abs(z)))

    x = x_ref[...]                                         # (T, B*HIDDEN) = (8, 64)

    # ---- one fused input projection: [ q|k|v (256) | gate (128) | a|b (8) ] --
    proj = mm(x, w_ref[...])                               # (8, 512)
    qkv = proj[:, PROJ_QKV:PROJ_QKV + B * QKV_DIM]         # (8, 256)
    gate = proj[:, PROJ_G:PROJ_G + LANES]                  # (8, 128)
    ab = proj[:, PROJ_AB:PROJ_AB + ABCOLS]                 # (8, 8)

    # ---- causal depthwise short conv + SiLU over all 256 qkv lanes -----------
    head = cslab_ref[C_HEAD:C_HEAD + 8, :]                 # conv taps + negA/dtb/maska
    conv_w = head[0:CONV_SIZE, :]                          # (4, 256)
    shift_m = cslab_ref[C_SHIFT:C_SHIFT + (CONV_SIZE - 1) * T, :][:, 0:T]   # (24, 8)
    shifted = mm(shift_m, qkv)                             # (24, 256) all shifted copies
    acc = qkv * conv_w[CONV_SIZE - 1:CONV_SIZE, :]
    for s in range(1, CONV_SIZE):
        acc = acc + (shifted[(s - 1) * T:s * T, :] *
                     conv_w[CONV_SIZE - 1 - s:CONV_SIZE - s, :])
    qkv = acc * jax.nn.sigmoid(acc)                        # SiLU

    # ---- decay exp(g) and beta, expanded to the 128 packed lanes -------------
    neg_a = head[4:5, 0:ABCOLS]                            # -exp(A_log), host-precomputed
    dtb = head[5:6, 0:ABCOLS]
    maska = head[6:7, 0:ABCOLS]
    decay = jnp.exp(neg_a * softplus(ab + dtb))            # (8, 8)
    beta = jax.nn.sigmoid(ab)                              # (8, 8)
    vals = jnp.where(maska > 0.5, decay, beta)
    gb = mm(vals, cslab_ref[C_EXPGB:C_EXPGB + ABCOLS, :])  # (8, 256) = [exp(g) | beta]
    gexp_all = gb[:, 0:LANES]                              # (8, 128)
    beta_all = gb[:, LANES:2 * LANES]                      # (8, 128)

    # ---- repack q/k/v into packed lanes + fused q/k L2 norm ------------------
    rpk = mm(qkv, cslab_ref[C_P:C_P + B * QKV_DIM, :])     # (8, 256) = [v | q | k]
    v_all = rpk[:, 0:LANES]                                # (8, 128)
    qk = rpk[:, LANES:2 * LANES]                           # (8, 128) packed q|k
    sumsq = mm(qk * qk, bslab_ref[B_G128:B_G128 + 2 * KDIM_P, :])
    qk_n = qk * lax.rsqrt(sumsq + L2_EPS)                  # SCALE folded into readout

    # ---- hoisted lane->sublane broadcast of k for ALL T steps ----------------
    xr = bslab_ref[B_XR:B_XR + T * HEAD_K_DIM, :]          # (128, 128)
    xsel = xr[:, 0:KDIM_P]                                 # (128, 64)
    rep16 = xr[:, KDIM_P:KDIM_P + T]                       # (128, 8)
    ysel = bslab_ref[B_YSEL:B_YSEL + KDIM_P, :]            # (64, 128)
    k_rep = mm(rep16, qk_n[:, KDIM_P:2 * KDIM_P])          # (128, 64): k_n rows repeated 16x
    kb_all = mm(k_rep * xsel, ysel)                        # (128, 128): kb for every t

    # ---- gated delta-rule recurrence: no MXU / no stores on the serial chain -
    state = jnp.zeros((HEAD_K_DIM, LANES), f32)
    states = []
    for t in range(T):                                     # statically unrolled
        kb = kb_all[t * HEAD_K_DIM:(t + 1) * HEAD_K_DIM, :]
        state = state * gexp_all[t:t + 1, :]               # gated decay
        kv = jnp.sum(kb * state, axis=0, keepdims=True)    # (1, 128)
        delta = (v_all[t:t + 1, :] - kv) * beta_all[t:t + 1, :]
        state = state + kb * delta                         # rank-1 delta update
        states.append(state)
    s_all = jnp.concatenate(states, axis=0)                # (T*Dk, 128) = (128, 128)

    # ---- readout o_t = SCALE * q_t . state_t for all t (post-loop matmuls) ---
    xr2 = bslab_ref[B_XR:B_XR + T * HEAD_K_DIM, :]
    q_rep = mm(xr2[:, KDIM_P:KDIM_P + T], qk_n[:, 0:KDIM_P])
    qb_all = mm(q_rep * xr2[:, 0:KDIM_P],
                bslab_ref[B_YSEL:B_YSEL + KDIM_P, :])      # (128, 128)
    o = mm(bslab_ref[B_RED:B_RED + T, :], qb_all * s_all)  # (8, 128)

    # ---- gated RMSNorm (norm weight folded into Wo) + output projection ------
    var = mm(o * o, bslab_ref[B_GV:B_GV + LANES, :])       # per-head mean(o^2)
    y = o * lax.rsqrt(var + NORM_EPS)
    y = y * (gate * jax.nn.sigmoid(gate))                  # swish output gate
    out_ref[...] = mm(y, bslab_ref[B_WO:B_WO + B * VALUE_DIM, :])   # lane-dense (8, 128)


# ------------------------------ forward wrapper -------------------------------
@jax.jit
def gated_delta_net_forward(x, p):
    b, t, _ = x.shape
    assert (b, t) == (B, T)
    f32 = jnp.float32
    eye_b = jnp.eye(B, dtype=f32)

    # --- fused, block-diagonalised projection weights (layout plumbing only) ---
    w_qkv = jnp.concatenate([p['Wq'], p['Wk'], p['Wv']], axis=1)     # (32, 128)
    w_all = jnp.zeros((B * HIDDEN, W_COLS), f32)
    w_all = w_all.at[:, PROJ_QKV:PROJ_QKV + B * QKV_DIM].set(jnp.kron(eye_b, w_qkv))
    w_all = w_all.at[:, PROJ_G:PROJ_G + LANES].set(jnp.kron(eye_b, p['Wg']))
    w_all = w_all.at[:, PROJ_AB:PROJ_AB + ABCOLS].set(
        jnp.kron(eye_b, jnp.concatenate([p['Wa'], p['Wb']], axis=1)))

    # --- 256-lane constant slab: conv taps + (-exp(A_log)) + dt_bias rows ------
    conv_dup = jnp.tile(
        jnp.concatenate([p['conv_q'], p['conv_k'], p['conv_v']], axis=1), (1, B))  # (4, 256)
    zeros_h = jnp.zeros((NUM_V_HEADS,), f32)
    neg_a_row = jnp.tile(jnp.concatenate([-jnp.exp(p['A_log']), zeros_h]), (B,))   # (8,)
    dtb_row = jnp.tile(jnp.concatenate([p['dt_bias'], zeros_h]), (B,))             # (8,)
    slab_c = jnp.asarray(_SLAB_C_STATIC)
    slab_c = slab_c.at[0:CONV_SIZE, :].set(conv_dup)
    slab_c = slab_c.at[4, 0:ABCOLS].set(neg_a_row)
    slab_c = slab_c.at[5, 0:ABCOLS].set(dtb_row)

    # --- 128-lane constant slab: RMSNorm weight folded into zero-padded Wo -----
    wo_fold = jnp.tile(p['norm_w'], (BH,))[:, None] * jnp.kron(eye_b, p['Wo'])      # (128, 64)
    slab_b = jnp.asarray(_SLAB_B_STATIC)
    slab_b = slab_b.at[B_WO:B_WO + B * VALUE_DIM, 0:B * HIDDEN].set(wo_fold)

    x_t = x.transpose(1, 0, 2).reshape(T, B * HIDDEN)                               # (8, 64)

    out = pl.pallas_call(
        _gdn_fused_kernel,
        out_shape=jax.ShapeDtypeStruct((T, LANES), f32),
    )(x_t, w_all, slab_c, slab_b)

    return out[:, :B * HIDDEN].reshape(T, B, HIDDEN).transpose(1, 0, 2)


# --------------------------- pure-JAX reference ------------------------------
def reference_forward(x, p):
    b, t, _ = x.shape
    x2 = x.reshape(b * t, HIDDEN)
    q = (x2 @ p['Wq']).reshape(b, t, KEY_DIM)
    k = (x2 @ p['Wk']).reshape(b, t, KEY_DIM)
    v = (x2 @ p['Wv']).reshape(b, t, VALUE_DIM)
    a = (x2 @ p['Wa']).reshape(b, t, NUM_V_HEADS)
    bp = (x2 @ p['Wb']).reshape(b, t, NUM_V_HEADS)
    gproj = (x2 @ p['Wg']).reshape(b, t, VALUE_DIM)

    def conv_silu(z, w):
        kk = w.shape[0]
        zp = jnp.pad(z, ((0, 0), (kk - 1, 0), (0, 0)))
        out = sum(zp[:, j:j + z.shape[1], :] * w[j] for j in range(kk))
        return out * jax.nn.sigmoid(out)

    q, k, v = conv_silu(q, p['conv_q']), conv_silu(k, p['conv_k']), conv_silu(v, p['conv_v'])
    beta = jax.nn.sigmoid(bp)
    gdec = -jnp.exp(p['A_log']) * jax.nn.softplus(a + p['dt_bias'])

    q = q.reshape(b, t, NUM_HEADS, HEAD_K_DIM)
    k = k.reshape(b, t, NUM_HEADS, HEAD_K_DIM)
    v = v.reshape(b, t, NUM_V_HEADS, HEAD_V_DIM)
    if NUM_V_HEADS > NUM_HEADS:
        rep = NUM_V_HEADS // NUM_HEADS
        q = jnp.repeat(q, rep, axis=2)
        k = jnp.repeat(k, rep, axis=2)

    qb_, kb_, vb_ = (z.transpose(0, 2, 1, 3) for z in (q, k, v))
    gb, bb = gdec.transpose(0, 2, 1), beta.transpose(0, 2, 1)
    q_n = qb_ * lax.rsqrt(jnp.sum(qb_ * qb_, -1, keepdims=True) + L2_EPS) * SCALE
    k_n = kb_ * lax.rsqrt(jnp.sum(kb_ * kb_, -1, keepdims=True) + L2_EPS)
    s = jnp.zeros((b, NUM_V_HEADS, HEAD_K_DIM, HEAD_V_DIM), jnp.float32)
    outs = []
    for ti in range(t):
        qt, kt, vt = q_n[:, :, ti], k_n[:, :, ti], vb_[:, :, ti]
        gt, bt = gb[:, :, ti], bb[:, :, ti]
        s = s * jnp.exp(gt)[..., None, None]
        kv = jnp.einsum('bhk,bhkv->bhv', kt, s)
        dv = (vt - kv) * bt[..., None]
        s = s + kt[..., :, None] * dv[..., None, :]
        outs.append(jnp.einsum('bhk,bhkv->bhv', qt, s))
    o = jnp.stack(outs, axis=2).transpose(0, 2, 1, 3)

    gate = gproj.reshape(b, t, NUM_V_HEADS, HEAD_V_DIM)
    var = jnp.mean(o * o, axis=-1, keepdims=True)
    y = o * lax.rsqrt(var + NORM_EPS) * p['norm_w'].reshape(1, 1, 1, HEAD_V_DIM)
    y = y * (gate * jax.nn.sigmoid(gate))
    return (y.reshape(b * t, VALUE_DIM) @ p['Wo']).reshape(b, t, HIDDEN)


# --------------------------------- main ---------------------------------------
if __name__ == "__main__":
    key = jax.random.PRNGKey(0)
    ks = jax.random.split(key, 13)

    def init(k, shape, fan_in):
        return jax.random.normal(k, shape, jnp.float32) / jnp.sqrt(float(fan_in))

    params = {
        'Wq': init(ks[0], (HIDDEN, KEY_DIM), HIDDEN),
        'Wk': init(ks[1], (HIDDEN, KEY_DIM), HIDDEN),
        'Wv': init(ks[2], (HIDDEN, VALUE_DIM), HIDDEN),
        'Wa': init(ks[3], (HIDDEN, NUM_V_HEADS), HIDDEN),
        'Wb': init(ks[4], (HIDDEN, NUM_V_HEADS), HIDDEN),
        'Wg': init(ks[5], (HIDDEN, VALUE_DIM), HIDDEN),
        'Wo': init(ks[6], (VALUE_DIM, HIDDEN), VALUE_DIM),
        'conv_q': init(ks[7], (CONV_SIZE, KEY_DIM), CONV_SIZE),
        'conv_k': init(ks[8], (CONV_SIZE, KEY_DIM), CONV_SIZE),
        'conv_v': init(ks[9], (CONV_SIZE, VALUE_DIM), CONV_SIZE),
        'A_log': jnp.log(jax.random.uniform(ks[10], (NUM_V_HEADS,), jnp.float32,
                                            0.5, 16.0)),
        'norm_w': jnp.ones((HEAD_V_DIM,), jnp.float32),
    }
    dt = jnp.exp(jax.random.uniform(ks[11], (NUM_V_HEADS,), jnp.float32) *
                 (math.log(0.1) - math.log(0.001)) + math.log(0.001))
    dt = jnp.maximum(dt, 1e-4)
    params['dt_bias'] = dt + jnp.log(-jnp.expm1(-dt))

    x = jax.random.normal(ks[12], (B, T, HIDDEN), jnp.float32)

    out = jax.block_until_ready(gated_delta_net_forward(x, params))

    with jax.default_matmul_precision("highest"):
        ref = reference_forward(x, params)
    rel_err = float(jnp.max(jnp.abs(out - ref)) / (jnp.max(jnp.abs(ref)) + 1e-6))

    assert out.shape == (B, T, HIDDEN)
    assert bool(jnp.all(jnp.isfinite(out)))
    assert rel_err < 1e-4, f"mismatch vs reference: rel_err={rel_err}"
    print("KERNEL_OK")
</pallas_src>

<mosaic_0001>
module attributes {stable_mosaic.version = 11 : i64} {
  func.func @_gdn_fused_kernel(%arg0: memref<8x64xf32, #tpu.memory_space<vmem>>, %arg1: memref<64x512xf32, #tpu.memory_space<vmem>>, %arg2: memref<296x256xf32, #tpu.memory_space<vmem>>, %arg3: memref<584x128xf32, #tpu.memory_space<vmem>>, %arg4: memref<8x128xf32, #tpu.memory_space<vmem>>) attributes {dimension_semantics = [], scalar_prefetch = 0 : i64, scratch_operands = 0 : i64, tpu.core_type = #tpu.core_type<tc>} {
    %c0 = arith.constant 0 : index
    %c0_0 = arith.constant 0 : index
    %0 = vector.load %arg0[%c0, %c0_0] : memref<8x64xf32, #tpu.memory_space<vmem>>, vector<8x64xf32>
    %c0_1 = arith.constant 0 : index
    %c0_2 = arith.constant 0 : index
    %1 = vector.load %arg1[%c0_1, %c0_2] : memref<64x512xf32, #tpu.memory_space<vmem>>, vector<64x512xf32>
    %cst = arith.constant dense<0.000000e+00> : vector<8x512xf32>
    %2 = tpu.matmul %0, %1, %cst {dimension_numbers = #tpu.dot_dimension_numbers<[1], [0], [0], [1], [0, 0, 1, 1], [], []>} : vector<8x64xf32>, vector<64x512xf32>, vector<8x512xf32> -> vector<8x512xf32>
    %3 = vector.extract_strided_slice %2 {offsets = [0, 0], sizes = [8, 256], strides = [1, 1]} : vector<8x512xf32> to vector<8x256xf32>
    %4 = vector.extract_strided_slice %2 {offsets = [0, 256], sizes = [8, 128], strides = [1, 1]} : vector<8x512xf32> to vector<8x128xf32>
    %5 = vector.extract_strided_slice %2 {offsets = [0, 384], sizes = [8, 8], strides = [1, 1]} : vector<8x512xf32> to vector<8x8xf32>
    %c0_3 = arith.constant 0 : index
    %c0_4 = arith.constant 0 : index
    %6 = vector.load %arg2[%c0_3, %c0_4] : memref<296x256xf32, #tpu.memory_space<vmem>>, vector<8x256xf32>
    %7 = vector.extract_strided_slice %6 {offsets = [0, 0], sizes = [4, 256], strides = [1, 1]} : vector<8x256xf32> to vector<4x256xf32>
    %c8 = arith.constant 8 : index
    %c0_5 = arith.constant 0 : index
    %8 = vector.load %arg2[%c8, %c0_5] : memref<296x256xf32, #tpu.memory_space<vmem>>, vector<24x256xf32>
    %9 = vector.extract_strided_slice %8 {offsets = [0, 0], sizes = [24, 8], strides = [1, 1]} : vector<24x256xf32> to vector<24x8xf32>
    %cst_6 = arith.constant dense<0.000000e+00> : vector<24x256xf32>
    %10 = tpu.matmul %9, %3, %cst_6 {dimension_numbers = #tpu.dot_dimension_numbers<[1], [0], [0], [1], [0, 0, 1, 1], [], []>} : vector<24x8xf32>, vector<8x256xf32>, vector<24x256xf32> -> vector<24x256xf32>
    %11 = vector.extract_strided_slice %7 {offsets = [3, 0], sizes = [1, 256], strides = [1, 1]} : vector<4x256xf32> to vector<1x256xf32>
    %12 = vector.broadcast %11 : vector<1x256xf32> to vector<8x256xf32>
    %13 = arith.mulf %3, %12 : vector<8x256xf32>
    %14 = vector.extract_strided_slice %10 {offsets = [0, 0], sizes = [8, 256], strides = [1, 1]} : vector<24x256xf32> to vector<8x256xf32>
    %15 = vector.extract_strided_slice %7 {offsets = [2, 0], sizes = [1, 256], strides = [1, 1]} : vector<4x256xf32> to vector<1x256xf32>
    %16 = vector.broadcast %15 : vector<1x256xf32> to vector<8x256xf32>
    %17 = arith.mulf %14, %16 : vector<8x256xf32>
    %18 = arith.addf %13, %17 : vector<8x256xf32>
    %19 = vector.extract_strided_slice %10 {offsets = [8, 0], sizes = [8, 256], strides = [1, 1]} : vector<24x256xf32> to vector<8x256xf32>
    %20 = vector.extract_strided_slice %7 {offsets = [1, 0], sizes = [1, 256], strides = [1, 1]} : vector<4x256xf32> to vector<1x256xf32>
    %21 = vector.broadcast %20 : vector<1x256xf32> to vector<8x256xf32>
    %22 = arith.mulf %19, %21 : vector<8x256xf32>
    %23 = arith.addf %18, %22 : vector<8x256xf32>
    %24 = vector.extract_strided_slice %10 {offsets = [16, 0], sizes = [8, 256], strides = [1, 1]} : vector<24x256xf32> to vector<8x256xf32>
    %25 = vector.extract_strided_slice %7 {offsets = [0, 0], sizes = [1, 256], strides = [1, 1]} : vector<4x256xf32> to vector<1x256xf32>
    %26 = vector.broadcast %25 : vector<1x256xf32> to vector<8x256xf32>
    %27 = arith.mulf %24, %26 : vector<8x256xf32>
    %28 = arith.addf %23, %27 : vector<8x256xf32>
    %29 = arith.negf %28 : vector<8x256xf32>
    %30 = math.exp %29 : vector<8x256xf32>
    %cst_7 = arith.constant 1.000000e+00 : f32
    %31 = vector.broadcast %cst_7 : f32 to vector<8x256xf32>
    %32 = arith.addf %31, %30 : vector<8x256xf32>
    %33 = arith.divf %31, %32 : vector<8x256xf32>
    %34 = arith.mulf %28, %33 : vector<8x256xf32>
    %35 = vector.extract_strided_slice %6 {offsets = [4, 0], sizes = [1, 8], strides = [1, 1]} : vector<8x256xf32> to vector<1x8xf32>
    %36 = vector.extract_strided_slice %6 {offsets = [5, 0], sizes = [1, 8], strides = [1, 1]} : vector<8x256xf32> to vector<1x8xf32>
    %37 = vector.extract_strided_slice %6 {offsets = [6, 0], sizes = [1, 8], strides = [1, 1]} : vector<8x256xf32> to vector<1x8xf32>
    %38 = vector.broadcast %36 : vector<1x8xf32> to vector<8x8xf32>
    %39 = arith.addf %5, %38 : vector<8x8xf32>
    %cst_8 = arith.constant 0.000000e+00 : f32
    %40 = vector.broadcast %cst_8 : f32 to vector<8x8xf32>
    %41 = arith.maximumf %39, %40 : vector<8x8xf32>
    %42 = math.absf %39 : vector<8x8xf32>
    %cst_9 = arith.constant 0.000000e+00 : f32
    %43 = vector.broadcast %cst_9 : f32 to vector<8x8xf32>
    %44 = arith.subf %43, %42 : vector<8x8xf32>
    %45 = math.exp %44 : vector<8x8xf32>
    %46 = math.log1p %45 : vector<8x8xf32>
    %47 = arith.addf %41, %46 : vector<8x8xf32>
    %48 = vector.broadcast %35 : vector<1x8xf32> to vector<8x8xf32>
    %49 = arith.mulf %48, %47 : vector<8x8xf32>
    %50 = math.exp %49 : vector<8x8xf32>
    %51 = arith.negf %5 : vector<8x8xf32>
    %52 = math.exp %51 : vector<8x8xf32>
    %cst_10 = arith.constant 1.000000e+00 : f32
    %53 = vector.broadcast %cst_10 : f32 to vector<8x8xf32>
    %54 = arith.addf %53, %52 : vector<8x8xf32>
    %55 = arith.divf %53, %54 : vector<8x8xf32>
    %cst_11 = arith.constant 5.000000e-01 : f32
    %56 = vector.broadcast %cst_11 : f32 to vector<1x8xf32>
    %57 = arith.cmpf ogt, %37, %56 : vector<1x8xf32>
    %58 = vector.shape_cast %57 : vector<1x8xi1> to vector<1x8xi1>
    %59 = vector.broadcast %58 : vector<1x8xi1> to vector<8x8xi1>
    %60 = arith.select %59, %50, %55 : vector<8x8xi1>, vector<8x8xf32>
    %c288 = arith.constant 288 : index
    %c0_12 = arith.constant 0 : index
    %61 = vector.load %arg2[%c288, %c0_12] : memref<296x256xf32, #tpu.memory_space<vmem>>, vector<8x256xf32>
    %cst_13 = arith.constant dense<0.000000e+00> : vector<8x256xf32>
    %62 = tpu.matmul %60, %61, %cst_13 {dimension_numbers = #tpu.dot_dimension_numbers<[1], [0], [0], [1], [0, 0, 1, 1], [], []>} : vector<8x8xf32>, vector<8x256xf32>, vector<8x256xf32> -> vector<8x256xf32>
    %63 = vector.extract_strided_slice %62 {offsets = [0, 0], sizes = [8, 128], strides = [1, 1]} : vector<8x256xf32> to vector<8x128xf32>
    %64 = vector.extract_strided_slice %62 {offsets = [0, 128], sizes = [8, 128], strides = [1, 1]} : vector<8x256xf32> to vector<8x128xf32>
    %c32 = arith.constant 32 : index
    %c0_14 = arith.constant 0 : index
    %65 = vector.load %arg2[%c32, %c0_14] : memref<296x256xf32, #tpu.memory_space<vmem>>, vector<256x256xf32>
    %cst_15 = arith.constant dense<0.000000e+00> : vector<8x256xf32>
    %66 = tpu.matmul %34, %65, %cst_15 {dimension_numbers = #tpu.dot_dimension_numbers<[1], [0], [0], [1], [0, 0, 1, 1], [], []>} : vector<8x256xf32>, vector<256x256xf32>, vector<8x256xf32> -> vector<8x256xf32>
    %67 = vector.extract_strided_slice %66 {offsets = [0, 0], sizes = [8, 128], strides = [1, 1]} : vector<8x256xf32> to vector<8x128xf32>
    %68 = vector.extract_strided_slice %66 {offsets = [0, 128], sizes = [8, 128], strides = [1, 1]} : vector<8x256xf32> to vector<8x128xf32>
    %69 = arith.mulf %68, %68 : vector<8x128xf32>
    %c200 = arith.constant 200 : index
    %c0_16 = arith.constant 0 : index
    %70 = vector.load %arg3[%c200, %c0_16] : memref<584x128xf32, #tpu.memory_space<vmem>>, vector<128x128xf32>
    %cst_17 = arith.constant dense<0.000000e+00> : vector<8x128xf32>
    %71 = tpu.matmul %69, %70, %cst_17 {dimension_numbers = #tpu.dot_dimension_numbers<[1], [0], [0], [1], [0, 0, 1, 1], [], []>} : vector<8x128xf32>, vector<128x128xf32>, vector<8x128xf32> -> vector<8x128xf32>
    %cst_18 = arith.constant 9.99999997E-7 : f32
    %72 = vector.broadcast %cst_18 : f32 to vector<8x128xf32>
    %73 = arith.addf %71, %72 : vector<8x128xf32>
    %74 = math.rsqrt %73 : vector<8x128xf32>
    %75 = arith.mulf %68, %74 : vector<8x128xf32>
    %c64 = arith.constant 64 : index
    %c0_19 = arith.constant 0 : index
    %76 = vector.load %arg3[%c64, %c0_19] : memref<584x128xf32, #tpu.memory_space<vmem>>, vector<128x128xf32>
    %77 = vector.extract_strided_slice %76 {offsets = [0, 0], sizes = [128, 64], strides = [1, 1]} : vector<128x128xf32> to vector<128x64xf32>
    %78 = vector.extract_strided_slice %76 {offsets = [0, 64], sizes = [128, 8], strides = [1, 1]} : vector<128x128xf32> to vector<128x8xf32>
    %c0_20 = arith.constant 0 : index
    %c0_21 = arith.constant 0 : index
    %79 = vector.load %arg3[%c0_20, %c0_21] : memref<584x128xf32, #tpu.memory_space<vmem>>, vector<64x128xf32>
    %80 = vector.extract_strided_slice %75 {offsets = [0, 64], sizes = [8, 64], strides = [1, 1]} : vector<8x128xf32> to vector<8x64xf32>
    %cst_22 = arith.constant dense<0.000000e+00> : vector<128x64xf32>
    %81 = tpu.matmul %78, %80, %cst_22 {dimension_numbers = #tpu.dot_dimension_numbers<[1], [0], [0], [1], [0, 0, 1, 1], [], []>} : vector<128x8xf32>, vector<8x64xf32>, vector<128x64xf32> -> vector<128x64xf32>
    %82 = arith.mulf %81, %77 : vector<128x64xf32>
    %cst_23 = arith.constant dense<0.000000e+00> : vector<128x128xf32>
    %83 = tpu.matmul %82, %79, %cst_23 {dimension_numbers = #tpu.dot_dimension_numbers<[1], [0], [0], [1], [0, 0, 1, 1], [], []>} : vector<128x64xf32>, vector<64x128xf32>, vector<128x128xf32> -> vector<128x128xf32>
    %cst_24 = arith.constant 0.000000e+00 : f32
    %84 = vector.broadcast %cst_24 : f32 to vector<16x128xf32>
    %85 = vector.extract_strided_slice %83 {offsets = [0, 0], sizes = [16, 128], strides = [1, 1]} : vector<128x128xf32> to vector<16x128xf32>
    %86 = vector.extract_strided_slice %63 {offsets = [0, 0], sizes = [1, 128], strides = [1, 1]} : vector<8x128xf32> to vector<1x128xf32>
    %87 = vector.broadcast %86 : vector<1x128xf32> to vector<16x128xf32>
    %88 = arith.mulf %84, %87 : vector<16x128xf32>
    %89 = arith.mulf %85, %88 : vector<16x128xf32>
    %cst_25 = arith.constant dense<0.000000e+00> : vector<128xf32>
    %90 = vector.multi_reduction <add>, %89, %cst_25 [0] : vector<16x128xf32> to vector<128xf32>
    %91 = vector.shape_cast %90 : vector<128xf32> to vector<1x128xf32>
    %92 = vector.extract_strided_slice %67 {offsets = [0, 0], sizes = [1, 128], strides = [1, 1]} : vector<8x128xf32> to vector<1x128xf32>
    %93 = arith.subf %92, %91 : vector<1x128xf32>
    %94 = vector.extract_strided_slice %64 {offsets = [0, 0], sizes = [1, 128], strides = [1, 1]} : vector<8x128xf32> to vector<1x128xf32>
    %95 = arith.mulf %93, %94 : vector<1x128xf32>
    %96 = vector.broadcast %95 : vector<1x128xf32> to vector<16x128xf32>
    %97 = arith.mulf %85, %96 : vector<16x128xf32>
    %98 = arith.addf %88, %97 : vector<16x128xf32>
    %99 = vector.extract_strided_slice %83 {offsets = [16, 0], sizes = [16, 128], strides = [1, 1]} : vector<128x128xf32> to vector<16x128xf32>
    %100 = vector.extract_strided_slice %63 {offsets = [1, 0], sizes = [1, 128], strides = [1, 1]} : vector<8x128xf32> to vector<1x128xf32>
    %101 = vector.broadcast %100 : vector<1x128xf32> to vector<16x128xf32>
    %102 = arith.mulf %98, %101 : vector<16x128xf32>
    %103 = arith.mulf %99, %102 : vector<16x128xf32>
    %cst_26 = arith.constant dense<0.000000e+00> : vector<128xf32>
    %104 = vector.multi_reduction <add>, %103, %cst_26 [0] : vector<16x128xf32> to vector<128xf32>
    %105 = vector.shape_cast %104 : vector<128xf32> to vector<1x128xf32>
    %106 = vector.extract_strided_slice %67 {offsets = [1, 0], sizes = [1, 128], strides = [1, 1]} : vector<8x128xf32> to vector<1x128xf32>
    %107 = arith.subf %106, %105 : vector<1x128xf32>
    %108 = vector.extract_strided_slice %64 {offsets = [1, 0], sizes = [1, 128], strides = [1, 1]} : vector<8x128xf32> to vector<1x128xf32>
    %109 = arith.mulf %107, %108 : vector<1x128xf32>
    %110 = vector.broadcast %109 : vector<1x128xf32> to vector<16x128xf32>
    %111 = arith.mulf %99, %110 : vector<16x128xf32>
    %112 = arith.addf %102, %111 : vector<16x128xf32>
    %113 = vector.extract_strided_slice %83 {offsets = [32, 0], sizes = [16, 128], strides = [1, 1]} : vector<128x128xf32> to vector<16x128xf32>
    %114 = vector.extract_strided_slice %63 {offsets = [2, 0], sizes = [1, 128], strides = [1, 1]} : vector<8x128xf32> to vector<1x128xf32>
    %115 = vector.broadcast %114 : vector<1x128xf32> to vector<16x128xf32>
    %116 = arith.mulf %112, %115 : vector<16x128xf32>
    %117 = arith.mulf %113, %116 : vector<16x128xf32>
    %cst_27 = arith.constant dense<0.000000e+00> : vector<128xf32>
    %118 = vector.multi_reduction <add>, %117, %cst_27 [0] : vector<16x128xf32> to vector<128xf32>
    %119 = vector.shape_cast %118 : vector<128xf32> to vector<1x128xf32>
    %120 = vector.extract_strided_slice %67 {offsets = [2, 0], sizes = [1, 128], strides = [1, 1]} : vector<8x128xf32> to vector<1x128xf32>
    %121 = arith.subf %120, %119 : vector<1x128xf32>
    %122 = vector.extract_strided_slice %64 {offsets = [2, 0], sizes = [1, 128], strides = [1, 1]} : vector<8x128xf32> to vector<1x128xf32>
    %123 = arith.mulf %121, %122 : vector<1x128xf32>
    %124 = vector.broadcast %123 : vector<1x128xf32> to vector<16x128xf32>
    %125 = arith.mulf %113, %124 : vector<16x128xf32>
    %126 = arith.addf %116, %125 : vector<16x128xf32>
    %127 = vector.extract_strided_slice %83 {offsets = [48, 0], sizes = [16, 128], strides = [1, 1]} : vector<128x128xf32> to vector<16x128xf32>
    %128 = vector.extract_strided_slice %63 {offsets = [3, 0], sizes = [1, 128], strides = [1, 1]} : vector<8x128xf32> to vector<1x128xf32>
    %129 = vector.broadcast %128 : vector<1x128xf32> to vector<16x128xf32>
    %130 = arith.mulf %126, %129 : vector<16x128xf32>
    %131 = arith.mulf %127, %130 : vector<16x128xf32>
    %cst_28 = arith.constant dense<0.000000e+00> : vector<128xf32>
    %132 = vector.multi_reduction <add>, %131, %cst_28 [0] : vector<16x128xf32> to vector<128xf32>
    %133 = vector.shape_cast %132 : vector<128xf32> to vector<1x128xf32>
    %134 = vector.extract_strided_slice %67 {offsets = [3, 0], sizes = [1, 128], strides = [1, 1]} : vector<8x128xf32> to vector<1x128xf32>
    %135 = arith.subf %134, %133 : vector<1x128xf32>
    %136 = vector.extract_strided_slice %64 {offsets = [3, 0], sizes = [1, 128], strides = [1, 1]} : vector<8x128xf32> to vector<1x128xf32>
    %137 = arith.mulf %135, %136 : vector<1x128xf32>
    %138 = vector.broadcast %137 : vector<1x128xf32> to vector<16x128xf32>
    %139 = arith.mulf %127, %138 : vector<16x128xf32>
    %140 = arith.addf %130, %139 : vector<16x128xf32>
    %141 = vector.extract_strided_slice %83 {offsets = [64, 0], sizes = [16, 128], strides = [1, 1]} : vector<128x128xf32> to vector<16x128xf32>
    %142 = vector.extract_strided_slice %63 {offsets = [4, 0], sizes = [1, 128], strides = [1, 1]} : vector<8x128xf32> to vector<1x128xf32>
    %143 = vector.broadcast %142 : vector<1x128xf32> to vector<16x128xf32>
    %144 = arith.mulf %140, %143 : vector<16x128xf32>
    %145 = arith.mulf %141, %144 : vector<16x128xf32>
    %cst_29 = arith.constant dense<0.000000e+00> : vector<128xf32>
    %146 = vector.multi_reduction <add>, %145, %cst_29 [0] : vector<16x128xf32> to vector<128xf32>
    %147 = vector.shape_cast %146 : vector<128xf32> to vector<1x128xf32>
    %148 = vector.extract_strided_slice %67 {offsets = [4, 0], sizes = [1, 128], strides = [1, 1]} : vector<8x128xf32> to vector<1x128xf32>
    %149 = arith.subf %148, %147 : vector<1x128xf32>
    %150 = vector.extract_strided_slice %64 {offsets = [4, 0], sizes = [1, 128], strides = [1, 1]} : vector<8x128xf32> to vector<1x128xf32>
    %151 = arith.mulf %149, %150 : vector<1x128xf32>
    %152 = vector.broadcast %151 : vector<1x128xf32> to vector<16x128xf32>
    %153 = arith.mulf %141, %152 : vector<16x128xf32>
    %154 = arith.addf %144, %153 : vector<16x128xf32>
    %155 = vector.extract_strided_slice %83 {offsets = [80, 0], sizes = [16, 128], strides = [1, 1]} : vector<128x128xf32> to vector<16x128xf32>
    %156 = vector.extract_strided_slice %63 {offsets = [5, 0], sizes = [1, 128], strides = [1, 1]} : vector<8x128xf32> to vector<1x128xf32>
    %157 = vector.broadcast %156 : vector<1x128xf32> to vector<16x128xf32>
    %158 = arith.mulf %154, %157 : vector<16x128xf32>
    %159 = arith.mulf %155, %158 : vector<16x128xf32>
    %cst_30 = arith.constant dense<0.000000e+00> : vector<128xf32>
    %160 = vector.multi_reduction <add>, %159, %cst_30 [0] : vector<16x128xf32> to vector<128xf32>
    %161 = vector.shape_cast %160 : vector<128xf32> to vector<1x128xf32>
    %162 = vector.extract_strided_slice %67 {offsets = [5, 0], sizes = [1, 128], strides = [1, 1]} : vector<8x128xf32> to vector<1x128xf32>
    %163 = arith.subf %162, %161 : vector<1x128xf32>
    %164 = vector.extract_strided_slice %64 {offsets = [5, 0], sizes = [1, 128], strides = [1, 1]} : vector<8x128xf32> to vector<1x128xf32>
    %165 = arith.mulf %163, %164 : vector<1x128xf32>
    %166 = vector.broadcast %165 : vector<1x128xf32> to vector<16x128xf32>
    %167 = arith.mulf %155, %166 : vector<16x128xf32>
    %168 = arith.addf %158, %167 : vector<16x128xf32>
    %169 = vector.extract_strided_slice %83 {offsets = [96, 0], sizes = [16, 128], strides = [1, 1]} : vector<128x128xf32> to vector<16x128xf32>
    %170 = vector.extract_strided_slice %63 {offsets = [6, 0], sizes = [1, 128], strides = [1, 1]} : vector<8x128xf32> to vector<1x128xf32>
    %171 = vector.broadcast %170 : vector<1x128xf32> to vector<16x128xf32>
    %172 = arith.mulf %168, %171 : vector<16x128xf32>
    %173 = arith.mulf %169, %172 : vector<16x128xf32>
    %cst_31 = arith.constant dense<0.000000e+00> : vector<128xf32>
    %174 = vector.multi_reduction <add>, %173, %cst_31 [0] : vector<16x128xf32> to vector<128xf32>
    %175 = vector.shape_cast %174 : vector<128xf32> to vector<1x128xf32>
    %176 = vector.extract_strided_slice %67 {offsets = [6, 0], sizes = [1, 128], strides = [1, 1]} : vector<8x128xf32> to vector<1x128xf32>
    %177 = arith.subf %176, %175 : vector<1x128xf32>
    %178 = vector.extract_strided_slice %64 {offsets = [6, 0], sizes = [1, 128], strides = [1, 1]} : vector<8x128xf32> to vector<1x128xf32>
    %179 = arith.mulf %177, %178 : vector<1x128xf32>
    %180 = vector.broadcast %179 : vector<1x128xf32> to vector<16x128xf32>
    %181 = arith.mulf %169, %180 : vector<16x128xf32>
    %182 = arith.addf %172, %181 : vector<16x128xf32>
    %183 = vector.extract_strided_slice %83 {offsets = [112, 0], sizes = [16, 128], strides = [1, 1]} : vector<128x128xf32> to vector<16x128xf32>
    %184 = vector.extract_strided_slice %63 {offsets = [7, 0], sizes = [1, 128], strides = [1, 1]} : vector<8x128xf32> to vector<1x128xf32>
    %185 = vector.broadcast %184 : vector<1x128xf32> to vector<16x128xf32>
    %186 = arith.mulf %182, %185 : vector<16x128xf32>
    %187 = arith.mulf %183, %186 : vector<16x128xf32>
    %cst_32 = arith.constant dense<0.000000e+00> : vector<128xf32>
    %188 = vector.multi_reduction <add>, %187, %cst_32 [0] : vector<16x128xf32> to vector<128xf32>
    %189 = vector.shape_cast %188 : vector<128xf32> to vector<1x128xf32>
    %190 = vector.extract_strided_slice %67 {offsets = [7, 0], sizes = [1, 128], strides = [1, 1]} : vector<8x128xf32> to vector<1x128xf32>
    %191 = arith.subf %190, %189 : vector<1x128xf32>
    %192 = vector.extract_strided_slice %64 {offsets = [7, 0], sizes = [1, 128], strides = [1, 1]} : vector<8x128xf32> to vector<1x128xf32>
    %193 = arith.mulf %191, %192 : vector<1x128xf32>
    %194 = vector.broadcast %193 : vector<1x128xf32> to vector<16x128xf32>
    %195 = arith.mulf %183, %194 : vector<16x128xf32>
    %196 = arith.addf %186, %195 : vector<16x128xf32>
    %197 = tpu.concatenate %98, %112, %126, %140, %154, %168, %182, %196 in 0 : vector<16x128xf32>, vector<16x128xf32>, vector<16x128xf32>, vector<16x128xf32>, vector<16x128xf32>, vector<16x128xf32>, vector<16x128xf32>, vector<16x128xf32> -> vector<128x128xf32>
    %c64_33 = arith.constant 64 : index
    %c0_34 = arith.constant 0 : index
    %198 = vector.load %arg3[%c64_33, %c0_34] : memref<584x128xf32, #tpu.memory_space<vmem>>, vector<128x128xf32>
    %199 = vector.extract_strided_slice %198 {offsets = [0, 64], sizes = [128, 8], strides = [1, 1]} : vector<128x128xf32> to vector<128x8xf32>
    %200 = vector.extract_strided_slice %75 {offsets = [0, 0], sizes = [8, 64], strides = [1, 1]} : vector<8x128xf32> to vector<8x64xf32>
    %cst_35 = arith.constant dense<0.000000e+00> : vector<128x64xf32>
    %201 = tpu.matmul %199, %200, %cst_35 {dimension_numbers = #tpu.dot_dimension_numbers<[1], [0], [0], [1], [0, 0, 1, 1], [], []>} : vector<128x8xf32>, vector<8x64xf32>, vector<128x64xf32> -> vector<128x64xf32>
    %202 = vector.extract_strided_slice %198 {offsets = [0, 0], sizes = [128, 64], strides = [1, 1]} : vector<128x128xf32> to vector<128x64xf32>
    %203 = arith.mulf %201, %202 : vector<128x64xf32>
    %c0_36 = arith.constant 0 : index
    %c0_37 = arith.constant 0 : index
    %204 = vector.load %arg3[%c0_36, %c0_37] : memref<584x128xf32, #tpu.memory_space<vmem>>, vector<64x128xf32>
    %cst_38 = arith.constant dense<0.000000e+00> : vector<128x128xf32>
    %205 = tpu.matmul %203, %204, %cst_38 {dimension_numbers = #tpu.dot_dimension_numbers<[1], [0], [0], [1], [0, 0, 1, 1], [], []>} : vector<128x64xf32>, vector<64x128xf32>, vector<128x128xf32> -> vector<128x128xf32>
    %c192 = arith.constant 192 : index
    %c0_39 = arith.constant 0 : index
    %206 = vector.load %arg3[%c192, %c0_39] : memref<584x128xf32, #tpu.memory_space<vmem>>, vector<8x128xf32>
    %207 = arith.mulf %205, %197 : vector<128x128xf32>
    %cst_40 = arith.constant dense<0.000000e+00> : vector<8x128xf32>
    %208 = tpu.matmul %206, %207, %cst_40 {dimension_numbers = #tpu.dot_dimension_numbers<[1], [0], [0], [1], [0, 0, 1, 1], [], []>} : vector<8x128xf32>, vector<128x128xf32>, vector<8x128xf32> -> vector<8x128xf32>
    %209 = arith.mulf %208, %208 : vector<8x128xf32>
    %c328 = arith.constant 328 : index
    %c0_41 = arith.constant 0 : index
    %210 = vector.load %arg3[%c328, %c0_41] : memref<584x128xf32, #tpu.memory_space<vmem>>, vector<128x128xf32>
    %cst_42 = arith.constant dense<0.000000e+00> : vector<8x128xf32>
    %211 = tpu.matmul %209, %210, %cst_42 {dimension_numbers = #tpu.dot_dimension_numbers<[1], [0], [0], [1], [0, 0, 1, 1], [], []>} : vector<8x128xf32>, vector<128x128xf32>, vector<8x128xf32> -> vector<8x128xf32>
    %cst_43 = arith.constant 9.99999974E-6 : f32
    %212 = vector.broadcast %cst_43 : f32 to vector<8x128xf32>
    %213 = arith.addf %211, %212 : vector<8x128xf32>
    %214 = math.rsqrt %213 : vector<8x128xf32>
    %215 = arith.mulf %208, %214 : vector<8x128xf32>
    %216 = arith.negf %4 : vector<8x128xf32>
    %217 = math.exp %216 : vector<8x128xf32>
    %cst_44 = arith.constant 1.000000e+00 : f32
    %218 = vector.broadcast %cst_44 : f32 to vector<8x128xf32>
    %219 = arith.addf %218, %217 : vector<8x128xf32>
    %220 = arith.divf %218, %219 : vector<8x128xf32>
    %221 = arith.mulf %4, %220 : vector<8x128xf32>
    %222 = arith.mulf %215, %221 : vector<8x128xf32>
    %c456 = arith.constant 456 : index
    %c0_45 = arith.constant 0 : index
    %223 = vector.load %arg3[%c456, %c0_45] : memref<584x128xf32, #tpu.memory_space<vmem>>, vector<128x128xf32>
    %cst_46 = arith.constant dense<0.000000e+00> : vector<8x128xf32>
    %224 = tpu.matmul %222, %223, %cst_46 {dimension_numbers = #tpu.dot_dimension_numbers<[1], [0], [0], [1], [0, 0, 1, 1], [], []>} : vector<8x128xf32>, vector<128x128xf32>, vector<8x128xf32> -> vector<8x128xf32>
    %c0_47 = arith.constant 0 : index
    %c0_48 = arith.constant 0 : index
    %225 = vector.load %arg4[%c0_47, %c0_48] : memref<8x128xf32, #tpu.memory_space<vmem>>, vector<8x128xf32>
    tpu.vector_store %arg4[%c0_47, %c0_48], %224 {strides = array<i32>} : memref<8x128xf32, #tpu.memory_space<vmem>>, vector<8x128xf32>,
    return
  }
}

</mosaic_0001>

<llo_original>
// kernel: tile.38
$region0: #{tile.38}
  #allocation0 [shape = 's32[1]{0}', space=sflag, size = 0x4, scoped, tag = 'scoped memory for tile.38']
  %s0 = inlined_call_operand.vmem [shape: f32[32], index: 0, kind: input, shape index: {}]
  %s1 = inlined_call_operand.vmem [shape: f32[4,32], index: 1, kind: output, shape index: {}]
  // Predicated region
  $region2: #{tile.38} parent=0 // pred_check
    _
  $region3: #{tile.38} parent=0 // pred_check_branch
    %3 = sbr.rel (0) target = $region5
  $region4: #{tile.38} parent=0 // pred_region
    _
  $region5: #{tile.38} parent=0 // pred_fallthru
    _
  %v4 = vld [vmem:[%s0] ss:$0 sm:$0xff]
  %5 = vst [vmem:[%s1] sm:$0xf] %v4

// kernel: mul.61
$region0: #{mul.61}
  %s0 = inlined_call_operand.vmem [shape: f32[4,32], index: 0, kind: input, shape index: {}]
  %s1 = inlined_call_operand.vmem [shape: f32[128], index: 1, kind: output, shape index: {}]
  $region1: #{mul.61} parent=0
    #allocation0 [shape = 'u8[4096]{0}', space=vmem, size = 0x1000, scoped, tag = 'scoped mem for output reshape']
    #allocation1 [shape = 'u8[4096]{0}', space=vmem, size = 0x1000, scoped, tag = 'scoped mem for input reshape']
    %s3 = ssub.s32 16, 1
    %v4 = vld [vmem:[%s0] sm:%s3]
    %5 = vst [vmem:[#allocation1] sm:%s3] %v4
    %v6 = vld [vmem:[#allocation1] sm:$0x1]
    %vm7 = vcmask 261120
    %8 = vst.msk [vmem:[#allocation0] sm:$0x1] %vm7, %v6
    %s9 = scalar_lea.vmem [#allocation1], 3
    %v10 = vld [vmem:[%s9] sm:$0x1]
    %11 = vrot.lane.b32.xlu0 %v10, 96
    %v12 = vpop.permute.xlu0 %11
    %vm13 = vcmask 1048320
    %14 = vst.msk [vmem:[#allocation0] sm:$0x1] %vm13, %v12
    %s15 = scalar_lea.vmem [#allocation1], 2
    %v16 = vld [vmem:[%s15] sm:$0x1]
    %17 = vrot.lane.b32.xlu0 %v16, 64
    %v18 = vpop.permute.xlu0 %17
    %vm19 = vcmask 785920
    %20 = vst.msk [vmem:[#allocation0] sm:$0x1] %vm19, %v18
    %s21 = scalar_lea.vmem [#allocation1], 1
    %v22 = vld [vmem:[%s21] sm:$0x1]
    %23 = vrot.lane.b32.xlu0 %v22, 32
    %v24 = vpop.permute.xlu0 %23
    %vm25 = vcmask 523520
    %26 = vst.msk [vmem:[#allocation0] sm:$0x1] %vm25, %v24
    %s28 = ssub.s32 2, 1
    %v29 = vld [vmem:[#allocation0] sm:%s28]
    %s31 = ssub.s32 2, 1
    %32 = vst [vmem:[%s1] sm:%s31] %v29

// kernel: tile.28
$region0: #{tile.28}
  #allocation0 [shape = 's32[1]{0}', space=sflag, size = 0x4, scoped, tag = 'scoped memory for tile.28']
  %s0 = inlined_call_operand.vmem [shape: f32[4], index: 0, kind: input, shape index: {}]
  %s1 = inlined_call_operand.vmem [shape: f32[2,4], index: 1, kind: output, shape index: {}]
  // Predicated region
  $region2: #{tile.28} parent=0 // pred_check
    _
  $region3: #{tile.28} parent=0 // pred_check_branch
    %3 = sbr.rel (0) target = $region5
  $region4: #{tile.28} parent=0 // pred_region
    _
  $region5: #{tile.28} parent=0 // pred_fallthru
    _
  %v4 = vld [vmem:[%s0] ss:$0 sm:$0xff]
  %5 = vst [vmem:[%s1] sm:$0x3] %v4

// kernel: gated_delta_net_forward.1
$region0: #{gated_delta_net_forward.1}
  #allocation0 [shape = 'u32[]', space=smem, size = 0x4, offset = 0x4, fixed_abs, tag = 'smem constant byte address 0x4 - core index']
  #allocation1 [shape = 'u32[72,128]{1,0:T(1,128)}', space=vmem, size = 0x9000, scoped, tag = 'internal scratch']
  %s0 = inlined_call_operand.vmem [shape: f32[8,64], index: 0, kind: input, shape index: {}]
  %s1 = inlined_call_operand.vmem [shape: f32[64,512], index: 1, kind: input, shape index: {}]
  %s2 = inlined_call_operand.vmem [shape: f32[296,256], index: 2, kind: input, shape index: {}]
  %s3 = inlined_call_operand.vmem [shape: f32[584,128], index: 3, kind: input, shape index: {}]
  %s4 = inlined_call_operand.vmem [shape: f32[8,128], index: 4, kind: output, shape index: {}]
  %s5 = sld [smem:[#allocation0]]
  $region26: #{gated_delta_net_forward.1} parent=0
    _
  %s7 = ssub.s32 1, %s5
  %s8 = scalar_select 0, %s7, %s5
  // Predicated region
  $region2: #{gated_delta_net_forward.1} parent=0 // pred_check
    _
  $region3: #{gated_delta_net_forward.1} parent=0 // pred_check_branch
    %10 = sbr.rel (0) target = $region5
  $region4: #{gated_delta_net_forward.1} parent=0 // pred_region
    _
  $region5: #{gated_delta_net_forward.1} parent=0 // pred_fallthru
    _
  // Predicated region
  $region6: #{gated_delta_net_forward.1} parent=0 // pred_check
    _
  $region7: #{gated_delta_net_forward.1} parent=0 // pred_check_branch
    %12 = sbr.rel (0) target = $region9
  $region8: #{gated_delta_net_forward.1} parent=0 // pred_region
    _
  $region9: #{gated_delta_net_forward.1} parent=0 // pred_fallthru
    _
  // Predicated region
  $region10: #{gated_delta_net_forward.1} parent=0 // pred_check
    _
  $region11: #{gated_delta_net_forward.1} parent=0 // pred_check_branch
    %14 = sbr.rel (0) target = $region13
  $region12: #{gated_delta_net_forward.1} parent=0 // pred_region
    _
  $region13: #{gated_delta_net_forward.1} parent=0 // pred_fallthru
    _
  // Predicated region
  $region14: #{gated_delta_net_forward.1} parent=0 // pred_check
    _
  $region15: #{gated_delta_net_forward.1} parent=0 // pred_check_branch
    %16 = sbr.rel (0) target = $region17
  $region16: #{gated_delta_net_forward.1} parent=0 // pred_region
    _
  $region17: #{gated_delta_net_forward.1} parent=0 // pred_fallthru
    _
  %v17 = vld [vmem:[%s0] sm:$0xff]
  %v18 = vld [vmem:[%s1] sm:$0xff]
  %v19 = vld [vmem:[%s1 + $0x8] sm:$0xff]
  %v20 = vld [vmem:[%s1 + $0x10] sm:$0xff]
  %v21 = vld [vmem:[%s1 + $0x18] sm:$0xff]
  %v22 = vld [vmem:[%s1 + $0x20] sm:$0xff]
  %v23 = vld [vmem:[%s1 + $0x28] sm:$0xff]
  %v24 = vld [vmem:[%s1 + $0x30] sm:$0xff]
  %v25 = vld [vmem:[%s1 + $0x38] sm:$0xff]
  %v26 = vld [vmem:[%s1 + $0x40] sm:$0xff]
  %v27 = vld [vmem:[%s1 + $0x48] sm:$0xff]
  %v28 = vld [vmem:[%s1 + $0x50] sm:$0xff]
  %v29 = vld [vmem:[%s1 + $0x58] sm:$0xff]
  %v30 = vld [vmem:[%s1 + $0x60] sm:$0xff]
  %v31 = vld [vmem:[%s1 + $0x68] sm:$0xff]
  %v32 = vld [vmem:[%s1 + $0x70] sm:$0xff]
  %v33 = vld [vmem:[%s1 + $0x78] sm:$0xff]
  %v34 = vld [vmem:[%s1 + $0x80] sm:$0xff]
  %v35 = vld [vmem:[%s1 + $0x88] sm:$0xff]
  %v36 = vld [vmem:[%s1 + $0x90] sm:$0xff]
  %v37 = vld [vmem:[%s1 + $0x98] sm:$0xff]
  %v38 = vld [vmem:[%s1 + $0xa0] sm:$0xff]
  %v39 = vld [vmem:[%s1 + $0xa8] sm:$0xff]
  %v40 = vld [vmem:[%s1 + $0xb0] sm:$0xff]
  %v41 = vld [vmem:[%s1 + $0xb8] sm:$0xff]
  %v42 = vld [vmem:[%s1 + $0xc0] sm:$0xff]
  %v43 = vld [vmem:[%s1 + $0xc8] sm:$0xff]
  %v44 = vld [vmem:[%s1 + $0xd0] sm:$0xff]
  %v45 = vld [vmem:[%s1 + $0xd8] sm:$0xff]
  %v46 = vld [vmem:[%s1 + $0xe0] sm:$0xff]
  %v47 = vld [vmem:[%s1 + $0xe8] sm:$0xff]
  %v48 = vld [vmem:[%s1 + $0xf0] sm:$0xff]
  %v49 = vld [vmem:[%s1 + $0xf8] sm:$0xff]
  %vm50 = vcmask 523264
  %v52 = vsel %vm50, %v17, 0
  %54 = vmatpush.msra.mxu0 0.0
  %55 = vmatpush.msra.mxu0 0.0
  %56 = vmatpush.msra.mxu0 0.0
  %57 = vmatpush.msra.mxu0 0.0
  %58 = vmatpush.msra.mxu0 0.0
  %59 = vmatpush.msra.mxu0 0.0
  %60 = vmatpush.msra.mxu0 0.0
  %61 = vmatpush.msra.mxu0 0.0
  %62 = vmatpush.msra.mxu0 %v46
  %63 = vmatpush.msra.mxu0 %v42
  %64 = vmatpush.msra.mxu0 %v38
  %65 = vmatpush.msra.mxu0 %v34
  %66 = vmatpush.msra.mxu0 %v30
  %67 = vmatpush.msra.mxu0 %v26
  %68 = vmatpush.msra.mxu0 %v22
  %69 = vmatpush.msra.mxu0 %v18
  %70 = vmatmul.f32.gmra.mxu0 %v52
  %v71 = vpop.f32.mrf.mxu0
  %v72 = vadd.f32 0.0, %v71
  %73 = vdwg.mxu0
  %74 = vmatpush.msra.mxu0 0.0
  %75 = vmatpush.msra.mxu0 0.0
  %76 = vmatpush.msra.mxu0 0.0
  %77 = vmatpush.msra.mxu0 0.0
  %78 = vmatpush.msra.mxu0 0.0
  %79 = vmatpush.msra.mxu0 0.0
  %80 = vmatpush.msra.mxu0 0.0
  %81 = vmatpush.msra.mxu0 0.0
  %82 = vmatpush.msra.mxu0 %v47
  %83 = vmatpush.msra.mxu0 %v43
  %84 = vmatpush.msra.mxu0 %v39
  %85 = vmatpush.msra.mxu0 %v35
  %86 = vmatpush.msra.mxu0 %v31
  %87 = vmatpush.msra.mxu0 %v27
  %88 = vmatpush.msra.mxu0 %v23
  %89 = vmatpush.msra.mxu0 %v19
  %90 = vmatmul.f32.gmra.mxu0 %v52
  %v91 = vpop.f32.mrf.mxu0
  %v92 = vadd.f32 0.0, %v91
  %93 = vdwg.mxu0
  %94 = vmatpush.msra.mxu0 0.0
  %95 = vmatpush.msra.mxu0 0.0
  %96 = vmatpush.msra.mxu0 0.0
  %97 = vmatpush.msra.mxu0 0.0
  %98 = vmatpush.msra.mxu0 0.0
  %99 = vmatpush.msra.mxu0 0.0
  %100 = vmatpush.msra.mxu0 0.0
  %101 = vmatpush.msra.mxu0 0.0
  %102 = vmatpush.msra.mxu0 %v48
  %103 = vmatpush.msra.mxu0 %v44
  %104 = vmatpush.msra.mxu0 %v40
  %105 = vmatpush.msra.mxu0 %v36
  %106 = vmatpush.msra.mxu0 %v32
  %107 = vmatpush.msra.mxu0 %v28
  %108 = vmatpush.msra.mxu0 %v24
  %109 = vmatpush.msra.mxu0 %v20
  %110 = vmatmul.f32.gmra.mxu0 %v52
  %v111 = vpop.f32.mrf.mxu0
  %v112 = vadd.f32 0.0, %v111
  %113 = vdwg.mxu0
  %114 = vmatpush.msra.mxu0 0.0
  %115 = vmatpush.msra.mxu0 0.0
  %116 = vmatpush.msra.mxu0 0.0
  %117 = vmatpush.msra.mxu0 0.0
  %118 = vmatpush.msra.mxu0 0.0
  %119 = vmatpush.msra.mxu0 0.0
  %120 = vmatpush.msra.mxu0 0.0
  %121 = vmatpush.msra.mxu0 0.0
  %122 = vmatpush.msra.mxu0 %v49
  %123 = vmatpush.msra.mxu0 %v45
  %124 = vmatpush.msra.mxu0 %v41
  %125 = vmatpush.msra.mxu0 %v37
  %126 = vmatpush.msra.mxu0 %v33
  %127 = vmatpush.msra.mxu0 %v29
  %128 = vmatpush.msra.mxu0 %v25
  %129 = vmatpush.msra.mxu0 %v21
  %130 = vmatmul.f32.gmra.mxu0 %v52
  %v131 = vpop.f32.mrf.mxu0
  %v132 = vadd.f32 0.0, %v131
  %133 = vdwg.mxu0
  %v134 = vld [vmem:[%s2] sm:$0xff]
  %v135 = vld [vmem:[%s2 + $0x8] sm:$0xff]
  %v136 = vld [vmem:[%s2 + $0x10] sm:$0xff]
  %v137 = vld [vmem:[%s2 + $0x20] sm:$0xff]
  %v138 = vld [vmem:[%s2 + $0x30] sm:$0xff]
  %vm139 = vcmask 64512
  %v141 = vsel %vm139, %v136, 0
  %v144 = vsel %vm139, %v137, 0
  %v147 = vsel %vm139, %v138, 0
  %149 = vmatpush.msra.mxu0 0.0
  %150 = vmatpush.msra.mxu0 0.0
  %151 = vmatpush.msra.mxu0 0.0
  %152 = vmatpush.msra.mxu0 0.0
  %153 = vmatpush.msra.mxu0 0.0
  %154 = vmatpush.msra.mxu0 0.0
  %155 = vmatpush.msra.mxu0 0.0
  %156 = vmatpush.msra.mxu0 0.0
  %157 = vmatpush.msra.mxu0 0.0
  %158 = vmatpush.msra.mxu0 0.0
  %159 = vmatpush.msra.mxu0 0.0
  %160 = vmatpush.msra.mxu0 0.0
  %161 = vmatpush.msra.mxu0 0.0
  %162 = vmatpush.msra.mxu0 0.0
  %163 = vmatpush.msra.mxu0 0.0
  %164 = vmatpush.msra.mxu0 %v72
  %165 = vmatmul.f32.gmra.mxu0 %v141
  %v166 = vpop.f32.mrf.mxu0
  %v167 = vadd.f32 0.0, %v166
  %168 = vmatmul.f32.gmra.mxu0 %v144
  %v169 = vpop.f32.mrf.mxu0
  %v170 = vadd.f32 0.0, %v169
  %171 = vmatmul.f32.gmra.mxu0 %v147
  %v172 = vpop.f32.mrf.mxu0
  %v173 = vadd.f32 0.0, %v172
  %174 = vdwg.mxu0
  %175 = vmatpush.msra.mxu0 0.0
  %176 = vmatpush.msra.mxu0 0.0
  %177 = vmatpush.msra.mxu0 0.0
  %178 = vmatpush.msra.mxu0 0.0
  %179 = vmatpush.msra.mxu0 0.0
  %180 = vmatpush.msra.mxu0 0.0
  %181 = vmatpush.msra.mxu0 0.0
  %182 = vmatpush.msra.mxu0 0.0
  %183 = vmatpush.msra.mxu0 0.0
  %184 = vmatpush.msra.mxu0 0.0
  %185 = vmatpush.msra.mxu0 0.0
  %186 = vmatpush.msra.mxu0 0.0
  %187 = vmatpush.msra.mxu0 0.0
  %188 = vmatpush.msra.mxu0 0.0
  %189 = vmatpush.msra.mxu0 0.0
  %190 = vmatpush.msra.mxu0 %v92
  %191 = vmatmul.f32.gmra.mxu0 %v141
  %v192 = vpop.f32.mrf.mxu0
  %v193 = vadd.f32 0.0, %v192
  %194 = vmatmul.f32.gmra.mxu0 %v144
  %v195 = vpop.f32.mrf.mxu0
  %v196 = vadd.f32 0.0, %v195
  %197 = vmatmul.f32.gmra.mxu0 %v147
  %v198 = vpop.f32.mrf.mxu0
  %v199 = vadd.f32 0.0, %v198
  %200 = vdwg.mxu0
  %v201 = vperm.slane %v134, 3
  %v202 = vperm.slane %v135, 3
  %v203 = vmul.f32 %v72, %v201
  %v204 = vmul.f32 %v92, %v202
  %v205 = vperm.slane %v134, 2
  %v206 = vperm.slane %v135, 2
  %v207 = vmul.f32 %v167, %v205
  %v208 = vmul.f32 %v193, %v206
  %v209 = vadd.f32 %v203, %v207
  %v210 = vadd.f32 %v204, %v208
  %v211 = vperm.slane %v134, 1
  %v212 = vperm.slane %v135, 1
  %v213 = vmul.f32 %v170, %v211
  %v214 = vmul.f32 %v196, %v212
  %v215 = vadd.f32 %v209, %v213
  %v216 = vadd.f32 %v210, %v214
  %v217 = vperm.slane %v134, 0
  %v218 = vperm.slane %v135, 0
  %v219 = vmul.f32 %v173, %v217
  %v220 = vmul.f32 %v199, %v218
  %v221 = vadd.f32 %v215, %v219
  %v222 = vadd.f32 %v216, %v220
  %v223 = vxor.u32 %v221, 2147483648
  %v224 = vxor.u32 %v222, 2147483648
  %v225 = vmul.f32 %v223, 1.442695
  %v226 = vpow.pop %v225
  %v227 = vmul.f32 %v224, 1.442695
  %v228 = vpow.pop %v227
  %v229 = vadd.f32 %v226, 1.0
  %v230 = vadd.f32 %v228, 1.0
  %v231 = vrcp.pop %v229
  %v232 = vmul.f32 %v229, %v231
  %v233 = vsub.f32 1.0, %v232
  %v234 = vmul.f32 %v231, %v233
  %v235 = vadd.f32 %v231, %v234
  %vm236 = vweird.f32 %v229
  %vm237 = vweird.f32 %v231
  %vm238 = vmor %vm236, %vm237
  %v239 = vsel %vm238, %v231, %v235
  %v240 = vand.u32 2147483647, %v229
  %vm241 = vcmp.eq.f32.partialorder %v240, 8.507059e+37
  %v242 = vand.u32 %v229, 2147483648
  %v243 = vor.u32 1.1754944e-38, %v242
  %v244 = vsel %vm241, %v243, %v239
  %v245 = vmul.f32 1.0, %v244
  %v246 = vrcp.pop %v230
  %v247 = vmul.f32 %v230, %v246
  %v248 = vsub.f32 1.0, %v247
  %v249 = vmul.f32 %v246, %v248
  %v250 = vadd.f32 %v246, %v249
  %vm251 = vweird.f32 %v230
  %vm252 = vweird.f32 %v246
  %vm253 = vmor %vm251, %vm252
  %v254 = vsel %vm253, %v246, %v250
  %v255 = vand.u32 2147483647, %v230
  %vm256 = vcmp.eq.f32.partialorder %v255, 8.507059e+37
  %v257 = vand.u32 %v230, 2147483648
  %v258 = vor.u32 1.1754944e-38, %v257
  %v259 = vsel %vm256, %v258, %v254
  %v260 = vmul.f32 1.0, %v259
  %v261 = vmul.f32 %v221, %v245
  %v262 = vmul.f32 %v222, %v260
  %v263 = vperm.slane %v134, 5
  %v264 = vadd.f32 %v132, %v263
  %v265 = vmax.f32 %v264, 0.0
  %v266 = vand.u32 2147483647, %v264
  %v267 = vsub.f32 0.0, %v266
  %v268 = vmul.f32 %v267, 1.442695
  %v269 = vpow.pop %v268
  %v270 = vadd.f32 %v269, 1.0
  %v271 = vlog2.pop %v270
  %v272 = vmul.f32 %v271, 0.6931472
  %v273 = vmul.f32 -0.5, %v269
  %v274 = vadd.f32 %v273, 1.0
  %v275 = vmul.f32 %v274, %v269
  %v276 = vand.u32 2147483647, %v269
  %vm277 = vcmp.lt.f32.partialorder %v276, 0.0004427343
  %v278 = vsel %vm277, %v275, %v272
  %v279 = vadd.f32 %v265, %v278
  %v280 = vperm.slane %v134, 4
  %v281 = vmul.f32 %v280, %v279
  %v282 = vmul.f32 %v281, 1.442695
  %v283 = vpow.pop %v282
  %v284 = vxor.u32 %v132, 2147483648
  %v285 = vmul.f32 %v284, 1.442695
  %v286 = vpow.pop %v285
  %v287 = vadd.f32 %v286, 1.0
  %v288 = vrcp.pop %v287
  %v289 = vmul.f32 %v287, %v288
  %v290 = vsub.f32 1.0, %v289
  %v291 = vmul.f32 %v288, %v290
  %v292 = vadd.f32 %v288, %v291
  %vm293 = vweird.f32 %v287
  %vm294 = vweird.f32 %v288
  %vm295 = vmor %vm293, %vm294
  %v296 = vsel %vm295, %v288, %v292
  %v297 = vand.u32 2147483647, %v287
  %vm298 = vcmp.eq.f32.partialorder %v297, 8.507059e+37
  %v299 = vand.u32 %v287, 2147483648
  %v300 = vor.u32 1.1754944e-38, %v299
  %v301 = vsel %vm298, %v300, %v296
  %v302 = vmul.f32 1.0, %v301
  %vm303 = vcmp.gt.f32.partialorder %v134, 0.5
  %v304 = vsel %vm303, 1, 0
  %v305 = vperm.slane %v304, 6
  %vm306 = vcmp.eq.s32.totalorder %v305, 1
  %v307 = vsel %vm306, %v283, %v302
  %v308 = vld [vmem:[%s2 + $0x240] sm:$0xff]
  %v309 = vld [vmem:[%s2 + $0x248] sm:$0xff]
  %v311 = vsel %vm139, %v307, 0
  %313 = vmatpush.msra.mxu0 0.0
  %314 = vmatpush.msra.mxu0 0.0
  %315 = vmatpush.msra.mxu0 0.0
  %316 = vmatpush.msra.mxu0 0.0
  %317 = vmatpush.msra.mxu0 0.0
  %318 = vmatpush.msra.mxu0 0.0
  %319 = vmatpush.msra.mxu0 0.0
  %320 = vmatpush.msra.mxu0 0.0
  %321 = vmatpush.msra.mxu0 0.0
  %322 = vmatpush.msra.mxu0 0.0
  %323 = vmatpush.msra.mxu0 0.0
  %324 = vmatpush.msra.mxu0 0.0
  %325 = vmatpush.msra.mxu0 0.0
  %326 = vmatpush.msra.mxu0 0.0
  %327 = vmatpush.msra.mxu0 0.0
  %328 = vmatpush.msra.mxu0 %v308
  %329 = vmatmul.f32.gmra.mxu0 %v311
  %v330 = vpop.f32.mrf.mxu0
  %v331 = vadd.f32 0.0, %v330
  %332 = vdwg.mxu0
  %333 = vmatpush.msra.mxu0 0.0
  %334 = vmatpush.msra.mxu0 0.0
  %335 = vmatpush.msra.mxu0 0.0
  %336 = vmatpush.msra.mxu0 0.0
  %337 = vmatpush.msra.mxu0 0.0
  %338 = vmatpush.msra.mxu0 0.0
  %339 = vmatpush.msra.mxu0 0.0
  %340 = vmatpush.msra.mxu0 0.0
  %341 = vmatpush.msra.mxu0 0.0
  %342 = vmatpush.msra.mxu0 0.0
  %343 = vmatpush.msra.mxu0 0.0
  %344 = vmatpush.msra.mxu0 0.0
  %345 = vmatpush.msra.mxu0 0.0
  %346 = vmatpush.msra.mxu0 0.0
  %347 = vmatpush.msra.mxu0 0.0
  %348 = vmatpush.msra.mxu0 %v309
  %349 = vmatmul.f32.gmra.mxu0 %v311
  %v350 = vpop.f32.mrf.mxu0
  %v351 = vadd.f32 0.0, %v350
  %352 = vdwg.mxu0
  %v353 = vld [vmem:[%s2 + $0x40] sm:$0xff]
  %v354 = vld [vmem:[%s2 + $0x48] sm:$0xff]
  %v355 = vld [vmem:[%s2 + $0x50] sm:$0xff]
  %v356 = vld [vmem:[%s2 + $0x58] sm:$0xff]
  %v357 = vld [vmem:[%s2 + $0x60] sm:$0xff]
  %v358 = vld [vmem:[%s2 + $0x68] sm:$0xff]
  %v359 = vld [vmem:[%s2 + $0x70] sm:$0xff]
  %v360 = vld [vmem:[%s2 + $0x78] sm:$0xff]
  %v361 = vld [vmem:[%s2 + $0x80] sm:$0xff]
  %v362 = vld [vmem:[%s2 + $0x88] sm:$0xff]
  %v363 = vld [vmem:[%s2 + $0x90] sm:$0xff]
  %v364 = vld [vmem:[%s2 + $0x98] sm:$0xff]
  %v365 = vld [vmem:[%s2 + $0xa0] sm:$0xff]
  %v366 = vld [vmem:[%s2 + $0xa8] sm:$0xff]
  %v367 = vld [vmem:[%s2 + $0xb0] sm:$0xff]
  %v368 = vld [vmem:[%s2 + $0xb8] sm:$0xff]
  %v369 = vld [vmem:[%s2 + $0xc0] sm:$0xff]
  %v370 = vld [vmem:[%s2 + $0xc8] sm:$0xff]
  %v371 = vld [vmem:[%s2 + $0xd0] sm:$0xff]
  %v372 = vld [vmem:[%s2 + $0xd8] sm:$0xff]
  %v373 = vld [vmem:[%s2 + $0xe0] sm:$0xff]
  %v374 = vld [vmem:[%s2 + $0xe8] sm:$0xff]
  %v375 = vld [vmem:[%s2 + $0xf0] sm:$0xff]
  %v376 = vld [vmem:[%s2 + $0xf8] sm:$0xff]
  %v377 = vld [vmem:[%s2 + $0x100] sm:$0xff]
  %v378 = vld [vmem:[%s2 + $0x108] sm:$0xff]
  %v379 = vld [vmem:[%s2 + $0x110] sm:$0xff]
  %v380 = vld [vmem:[%s2 + $0x118] sm:$0xff]
  %v381 = vld [vmem:[%s2 + $0x120] sm:$0xff]
  %v382 = vld [vmem:[%s2 + $0x128] sm:$0xff]
  %v383 = vld [vmem:[%s2 + $0x130] sm:$0xff]
  %v384 = vld [vmem:[%s2 + $0x138] sm:$0xff]
  %v385 = vld [vmem:[%s2 + $0x140] sm:$0xff]
  %v386 = vld [vmem:[%s2 + $0x148] sm:$0xff]
  %v387 = vld [vmem:[%s2 + $0x150] sm:$0xff]
  %v388 = vld [vmem:[%s2 + $0x158] sm:$0xff]
  %v389 = vld [vmem:[%s2 + $0x160] sm:$0xff]
  %v390 = vld [vmem:[%s2 + $0x168] sm:$0xff]
  %v391 = vld [vmem:[%s2 + $0x170] sm:$0xff]
  %v392 = vld [vmem:[%s2 + $0x178] sm:$0xff]
  %v393 = vld [vmem:[%s2 + $0x180] sm:$0xff]
  %v394 = vld [vmem:[%s2 + $0x188] sm:$0xff]
  %v395 = vld [vmem:[%s2 + $0x190] sm:$0xff]
  %v396 = vld [vmem:[%s2 + $0x198] sm:$0xff]
  %v397 = vld [vmem:[%s2 + $0x1a0] sm:$0xff]
  %v398 = vld [vmem:[%s2 + $0x1a8] sm:$0xff]
  %v399 = vld [vmem:[%s2 + $0x1b0] sm:$0xff]
  %v400 = vld [vmem:[%s2 + $0x1b8] sm:$0xff]
  %v401 = vld [vmem:[%s2 + $0x1c0] sm:$0xff]
  %v402 = vld [vmem:[%s2 + $0x1c8] sm:$0xff]
  %v403 = vld [vmem:[%s2 + $0x1d0] sm:$0xff]
  %v404 = vld [vmem:[%s2 + $0x1d8] sm:$0xff]
  %v405 = vld [vmem:[%s2 + $0x1e0] sm:$0xff]
  %v406 = vld [vmem:[%s2 + $0x1e8] sm:$0xff]
  %v407 = vld [vmem:[%s2 + $0x1f0] sm:$0xff]
  %v408 = vld [vmem:[%s2 + $0x1f8] sm:$0xff]
  %v409 = vld [vmem:[%s2 + $0x200] sm:$0xff]
  %v410 = vld [vmem:[%s2 + $0x208] sm:$0xff]
  %v411 = vld [vmem:[%s2 + $0x210] sm:$0xff]
  %v412 = vld [vmem:[%s2 + $0x218] sm:$0xff]
  %v413 = vld [vmem:[%s2 + $0x220] sm:$0xff]
  %v414 = vld [vmem:[%s2 + $0x228] sm:$0xff]
  %v415 = vld [vmem:[%s2 + $0x230] sm:$0xff]
  %v416 = vld [vmem:[%s2 + $0x238] sm:$0xff]
  %417 = vmatpush.msra.mxu0 %v383
  %418 = vmatpush.msra.mxu0 %v381
  %419 = vmatpush.msra.mxu0 %v379
  %420 = vmatpush.msra.mxu0 %v377
  %421 = vmatpush.msra.mxu0 %v375
  %422 = vmatpush.msra.mxu0 %v373
  %423 = vmatpush.msra.mxu0 %v371
  %424 = vmatpush.msra.mxu0 %v369
  %425 = vmatpush.msra.mxu0 %v367
  %426 = vmatpush.msra.mxu0 %v365
  %427 = vmatpush.msra.mxu0 %v363
  %428 = vmatpush.msra.mxu0 %v361
  %429 = vmatpush.msra.mxu0 %v359
  %430 = vmatpush.msra.mxu0 %v357
  %431 = vmatpush.msra.mxu0 %v355
  %432 = vmatpush.msra.mxu0 %v353
  %433 = vmatmul.f32.gmra.mxu0 %v261
  %v434 = vpop.f32.mrf.mxu0
  %v435 = vadd.f32 0.0, %v434
  %436 = vdwg.mxu0
  %437 = vmatpush.msra.mxu0 %v415
  %438 = vmatpush.msra.mxu0 %v413
  %439 = vmatpush.msra.mxu0 %v411
  %440 = vmatpush.msra.mxu0 %v409
  %441 = vmatpush.msra.mxu0 %v407
  %442 = vmatpush.msra.mxu0 %v405
  %443 = vmatpush.msra.mxu0 %v403
  %444 = vmatpush.msra.mxu0 %v401
  %445 = vmatpush.msra.mxu0 %v399
  %446 = vmatpush.msra.mxu0 %v397
  %447 = vmatpush.msra.mxu0 %v395
  %448 = vmatpush.msra.mxu0 %v393
  %449 = vmatpush.msra.mxu0 %v391
  %450 = vmatpush.msra.mxu0 %v389
  %451 = vmatpush.msra.mxu0 %v387
  %452 = vmatpush.msra.mxu0 %v385
  %453 = vmatmul.f32.gmra.mxu0 %v262
  %v454 = vpop.f32.mrf.mxu0
  %v455 = vadd.f32 %v435, %v454
  %456 = vdwg.mxu0
  %457 = vmatpush.msra.mxu0 %v384
  %458 = vmatpush.msra.mxu0 %v382
  %459 = vmatpush.msra.mxu0 %v380
  %460 = vmatpush.msra.mxu0 %v378
  %461 = vmatpush.msra.mxu0 %v376
  %462 = vmatpush.msra.mxu0 %v374
  %463 = vmatpush.msra.mxu0 %v372
  %464 = vmatpush.msra.mxu0 %v370
  %465 = vmatpush.msra.mxu0 %v368
  %466 = vmatpush.msra.mxu0 %v366
  %467 = vmatpush.msra.mxu0 %v364
  %468 = vmatpush.msra.mxu0 %v362
  %469 = vmatpush.msra.mxu0 %v360
  %470 = vmatpush.msra.mxu0 %v358
  %471 = vmatpush.msra.mxu0 %v356
  %472 = vmatpush.msra.mxu0 %v354
  %473 = vmatmul.f32.gmra.mxu0 %v261
  %v474 = vpop.f32.mrf.mxu0
  %v475 = vadd.f32 0.0, %v474
  %476 = vdwg.mxu0
  %477 = vmatpush.msra.mxu0 %v416
  %478 = vmatpush.msra.mxu0 %v414
  %479 = vmatpush.msra.mxu0 %v412
  %480 = vmatpush.msra.mxu0 %v410
  %481 = vmatpush.msra.mxu0 %v408
  %482 = vmatpush.msra.mxu0 %v406
  %483 = vmatpush.msra.mxu0 %v404
  %484 = vmatpush.msra.mxu0 %v402
  %485 = vmatpush.msra.mxu0 %v400
  %486 = vmatpush.msra.mxu0 %v398
  %487 = vmatpush.msra.mxu0 %v396
  %488 = vmatpush.msra.mxu0 %v394
  %489 = vmatpush.msra.mxu0 %v392
  %490 = vmatpush.msra.mxu0 %v390
  %491 = vmatpush.msra.mxu0 %v388
  %492 = vmatpush.msra.mxu0 %v386
  %493 = vmatmul.f32.gmra.mxu0 %v262
  %v494 = vpop.f32.mrf.mxu0
  %v495 = vadd.f32 %v475, %v494
  %496 = vdwg.mxu0
  %v497 = vmul.f32 %v495, %v495
  %v498 = vld [vmem:[%s3 + $0xc8] sm:$0xff]
  %v499 = vld [vmem:[%s3 + $0xd0] sm:$0xff]
  %v500 = vld [vmem:[%s3 + $0xd8] sm:$0xff]
  %v501 = vld [vmem:[%s3 + $0xe0] sm:$0xff]
  %v502 = vld [vmem:[%s3 + $0xe8] sm:$0xff]
  %v503 = vld [vmem:[%s3 + $0xf0] sm:$0xff]
  %v504 = vld [vmem:[%s3 + $0xf8] sm:$0xff]
  %v505 = vld [vmem:[%s3 + $0x100] sm:$0xff]
  %v506 = vld [vmem:[%s3 + $0x108] sm:$0xff]
  %v507 = vld [vmem:[%s3 + $0x110] sm:$0xff]
  %v508 = vld [vmem:[%s3 + $0x118] sm:$0xff]
  %v509 = vld [vmem:[%s3 + $0x120] sm:$0xff]
  %v510 = vld [vmem:[%s3 + $0x128] sm:$0xff]
  %v511 = vld [vmem:[%s3 + $0x130] sm:$0xff]
  %v512 = vld [vmem:[%s3 + $0x138] sm:$0xff]
  %v513 = vld [vmem:[%s3 + $0x140] sm:$0xff]
  %514 = vmatpush.msra.mxu0 %v513
  %515 = vmatpush.msra.mxu0 %v512
  %516 = vmatpush.msra.mxu0 %v511
  %517 = vmatpush.msra.mxu0 %v510
  %518 = vmatpush.msra.mxu0 %v509
  %519 = vmatpush.msra.mxu0 %v508
  %520 = vmatpush.msra.mxu0 %v507
  %521 = vmatpush.msra.mxu0 %v506
  %522 = vmatpush.msra.mxu0 %v505
  %523 = vmatpush.msra.mxu0 %v504
  %524 = vmatpush.msra.mxu0 %v503
  %525 = vmatpush.msra.mxu0 %v502
  %526 = vmatpush.msra.mxu0 %v501
  %527 = vmatpush.msra.mxu0 %v500
  %528 = vmatpush.msra.mxu0 %v499
  %529 = vmatpush.msra.mxu0 %v498
  %530 = vmatmul.f32.gmra.mxu0 %v497
  %v531 = vpop.f32.mrf.mxu0
  %v532 = vadd.f32 1e-06, %v531
  %533 = vdwg.mxu0
  %v534 = vrsqrt.pop %v532
  %v535 = vmul.f32 %v534, %v532
  %v536 = vmul.f32 %v535, %v534
  %v537 = vmul.f32 0.5, %v536
  %v538 = vsub.f32 1.5, %v537
  %v539 = vmul.f32 %v534, %v538
  %vm540 = vweird.f32 %v532
  %vm541 = vweird.f32 %v534
  %vm542 = vmor %vm540, %vm541
  %v543 = vsel %vm542, %v534, %v539
  %v544 = vmul.f32 %v495, %v543
  %v545 = vld [vmem:[%s3 + $0x40] sm:$0xff]
  %v546 = vld [vmem:[%s3 + $0x48] sm:$0xff]
  %v547 = vld [vmem:[%s3 + $0x50] sm:$0xff]
  %v548 = vld [vmem:[%s3 + $0x58] sm:$0xff]
  %v549 = vld [vmem:[%s3 + $0x60] sm:$0xff]
  %v550 = vld [vmem:[%s3 + $0x68] sm:$0xff]
  %v551 = vld [vmem:[%s3 + $0x70] sm:$0xff]
  %v552 = vld [vmem:[%s3 + $0x78] sm:$0xff]
  %v553 = vld [vmem:[%s3 + $0x80] sm:$0xff]
  %v554 = vld [vmem:[%s3 + $0x88] sm:$0xff]
  %v555 = vld [vmem:[%s3 + $0x90] sm:$0xff]
  %v556 = vld [vmem:[%s3 + $0x98] sm:$0xff]
  %v557 = vld [vmem:[%s3 + $0xa0] sm:$0xff]
  %v558 = vld [vmem:[%s3 + $0xa8] sm:$0xff]
  %v559 = vld [vmem:[%s3 + $0xb0] sm:$0xff]
  %v560 = vld [vmem:[%s3 + $0xb8] sm:$0xff]
  %v561 = vld [vmem:[%s3] sm:$0xff]
  %v562 = vld [vmem:[%s3 + $0x8] sm:$0xff]
  %v563 = vld [vmem:[%s3 + $0x10] sm:$0xff]
  %v564 = vld [vmem:[%s3 + $0x18] sm:$0xff]
  %v565 = vld [vmem:[%s3 + $0x20] sm:$0xff]
  %v566 = vld [vmem:[%s3 + $0x28] sm:$0xff]
  %v567 = vld [vmem:[%s3 + $0x30] sm:$0xff]
  %v568 = vld [vmem:[%s3 + $0x38] sm:$0xff]
  %585 = vrot.lane.b32.xlu0 %v545, 64
  %v586 = vpop.permute.xlu0 %585
  %587 = vrot.lane.b32.xlu0 %v546, 64
  %v588 = vpop.permute.xlu0 %587
  %589 = vrot.lane.b32.xlu0 %v547, 64
  %v590 = vpop.permute.xlu0 %589
  %591 = vrot.lane.b32.xlu0 %v548, 64
  %v592 = vpop.permute.xlu0 %591
  %593 = vrot.lane.b32.xlu0 %v549, 64
  %v594 = vpop.permute.xlu0 %593
  %595 = vrot.lane.b32.xlu0 %v550, 64
  %v596 = vpop.permute.xlu0 %595
  %597 = vrot.lane.b32.xlu0 %v551, 64
  %v598 = vpop.permute.xlu0 %597
  %599 = vrot.lane.b32.xlu0 %v552, 64
  %v600 = vpop.permute.xlu0 %599
  %601 = vrot.lane.b32.xlu0 %v553, 64
  %v602 = vpop.permute.xlu0 %601
  %603 = vrot.lane.b32.xlu0 %v554, 64
  %v604 = vpop.permute.xlu0 %603
  %605 = vrot.lane.b32.xlu0 %v555, 64
  %v606 = vpop.permute.xlu0 %605
  %607 = vrot.lane.b32.xlu0 %v556, 64
  %v608 = vpop.permute.xlu0 %607
  %609 = vrot.lane.b32.xlu0 %v557, 64
  %v610 = vpop.permute.xlu0 %609
  %611 = vrot.lane.b32.xlu0 %v558, 64
  %v612 = vpop.permute.xlu0 %611
  %613 = vrot.lane.b32.xlu0 %v559, 64
  %v614 = vpop.permute.xlu0 %613
  %615 = vrot.lane.b32.xlu0 %v560, 64
  %v616 = vpop.permute.xlu0 %615
  %618 = vrot.lane.b32.xlu0 %v544, 64
  %v619 = vpop.permute.xlu0 %618
  %v621 = vsel %vm139, %v586, 0
  %v623 = vsel %vm139, %v588, 0
  %v625 = vsel %vm139, %v590, 0
  %v627 = vsel %vm139, %v592, 0
  %v629 = vsel %vm139, %v594, 0
  %v631 = vsel %vm139, %v596, 0
  %v633 = vsel %vm139, %v598, 0
  %v635 = vsel %vm139, %v600, 0
  %v637 = vsel %vm139, %v602, 0
  %v639 = vsel %vm139, %v604, 0
  %v641 = vsel %vm139, %v606, 0
  %v643 = vsel %vm139, %v608, 0
  %v645 = vsel %vm139, %v610, 0
  %v647 = vsel %vm139, %v612, 0
  %v649 = vsel %vm139, %v614, 0
  %v651 = vsel %vm139, %v616, 0
  %653 = vmatpush.msra.mxu0 0.0
  %654 = vmatpush.msra.mxu0 0.0
  %655 = vmatpush.msra.mxu0 0.0
  %656 = vmatpush.msra.mxu0 0.0
  %657 = vmatpush.msra.mxu0 0.0
  %658 = vmatpush.msra.mxu0 0.0
  %659 = vmatpush.msra.mxu0 0.0
  %660 = vmatpush.msra.mxu0 0.0
  %661 = vmatpush.msra.mxu0 0.0
  %662 = vmatpush.msra.mxu0 0.0
  %663 = vmatpush.msra.mxu0 0.0
  %664 = vmatpush.msra.mxu0 0.0
  %665 = vmatpush.msra.mxu0 0.0
  %666 = vmatpush.msra.mxu0 0.0
  %667 = vmatpush.msra.mxu0 0.0
  %668 = vmatpush.msra.mxu0 %v619
  %669 = vmatmul.f32.gmra.mxu0 %v621
  %v670 = vpop.f32.mrf.mxu0
  %v671 = vadd.f32 0.0, %v670
  %672 = vmatmul.f32.gmra.mxu0 %v623
  %v673 = vpop.f32.mrf.mxu0
  %v674 = vadd.f32 0.0, %v673
  %675 = vmatmul.f32.gmra.mxu0 %v625
  %v676 = vpop.f32.mrf.mxu0
  %v677 = vadd.f32 0.0, %v676
  %678 = vmatmul.f32.gmra.mxu0 %v627
  %v679 = vpop.f32.mrf.mxu0
  %v680 = vadd.f32 0.0, %v679
  %681 = vmatmul.f32.gmra.mxu0 %v629
  %v682 = vpop.f32.mrf.mxu0
  %v683 = vadd.f32 0.0, %v682
  %684 = vmatmul.f32.gmra.mxu0 %v631
  %v685 = vpop.f32.mrf.mxu0
  %v686 = vadd.f32 0.0, %v685
  %687 = vmatmul.f32.gmra.mxu0 %v633
  %v688 = vpop.f32.mrf.mxu0
  %v689 = vadd.f32 0.0, %v688
  %690 = vmatmul.f32.gmra.mxu0 %v635
  %v691 = vpop.f32.mrf.mxu0
  %v692 = vadd.f32 0.0, %v691
  %693 = vmatmul.f32.gmra.mxu0 %v637
  %v694 = vpop.f32.mrf.mxu0
  %v695 = vadd.f32 0.0, %v694
  %696 = vmatmul.f32.gmra.mxu0 %v639
  %v697 = vpop.f32.mrf.mxu0
  %v698 = vadd.f32 0.0, %v697
  %699 = vmatmul.f32.gmra.mxu0 %v641
  %v700 = vpop.f32.mrf.mxu0
  %v701 = vadd.f32 0.0, %v700
  %702 = vmatmul.f32.gmra.mxu0 %v643
  %v703 = vpop.f32.mrf.mxu0
  %v704 = vadd.f32 0.0, %v703
  %705 = vmatmul.f32.gmra.mxu0 %v645
  %v706 = vpop.f32.mrf.mxu0
  %v707 = vadd.f32 0.0, %v706
  %708 = vmatmul.f32.gmra.mxu0 %v647
  %v709 = vpop.f32.mrf.mxu0
  %v710 = vadd.f32 0.0, %v709
  %711 = vmatmul.f32.gmra.mxu0 %v649
  %v712 = vpop.f32.mrf.mxu0
  %v713 = vadd.f32 0.0, %v712
  %714 = vmatmul.f32.gmra.mxu0 %v651
  %v715 = vpop.f32.mrf.mxu0
  %v716 = vadd.f32 0.0, %v715
  %717 = vdwg.mxu0
  %v718 = vmul.f32 %v671, %v545
  %v719 = vmul.f32 %v674, %v546
  %v720 = vmul.f32 %v677, %v547
  %v721 = vmul.f32 %v680, %v548
  %v722 = vmul.f32 %v683, %v549
  %v723 = vmul.f32 %v686, %v550
  %v724 = vmul.f32 %v689, %v551
  %v725 = vmul.f32 %v692, %v552
  %v726 = vmul.f32 %v695, %v553
  %v727 = vmul.f32 %v698, %v554
  %v728 = vmul.f32 %v701, %v555
  %v729 = vmul.f32 %v704, %v556
  %v730 = vmul.f32 %v707, %v557
  %v731 = vmul.f32 %v710, %v558
  %v732 = vmul.f32 %v713, %v559
  %v733 = vmul.f32 %v716, %v560
  %v735 = vsel %vm50, %v718, 0
  %v738 = vsel %vm50, %v719, 0
  %v741 = vsel %vm50, %v720, 0
  %v744 = vsel %vm50, %v721, 0
  %v747 = vsel %vm50, %v722, 0
  %v750 = vsel %vm50, %v723, 0
  %v753 = vsel %vm50, %v724, 0
  %v756 = vsel %vm50, %v725, 0
  %v759 = vsel %vm50, %v726, 0
  %v762 = vsel %vm50, %v727, 0
  %v765 = vsel %vm50, %v728, 0
  %v768 = vsel %vm50, %v729, 0
  %v771 = vsel %vm50, %v730, 0
  %v774 = vsel %vm50, %v731, 0
  %v777 = vsel %vm50, %v732, 0
  %v780 = vsel %vm50, %v733, 0
  %782 = vmatpush.msra.mxu0 0.0
  %783 = vmatpush.msra.mxu0 0.0
  %784 = vmatpush.msra.mxu0 0.0
  %785 = vmatpush.msra.mxu0 0.0
  %786 = vmatpush.msra.mxu0 0.0
  %787 = vmatpush.msra.mxu0 0.0
  %788 = vmatpush.msra.mxu0 0.0
  %789 = vmatpush.msra.mxu0 0.0
  %790 = vmatpush.msra.mxu0 %v568
  %791 = vmatpush.msra.mxu0 %v567
  %792 = vmatpush.msra.mxu0 %v566
  %793 = vmatpush.msra.mxu0 %v565
  %794 = vmatpush.msra.mxu0 %v564
  %795 = vmatpush.msra.mxu0 %v563
  %796 = vmatpush.msra.mxu0 %v562
  %797 = vmatpush.msra.mxu0 %v561
  %798 = vmatmul.f32.gmra.mxu0 %v735
  %v799 = vpop.f32.mrf.mxu0
  %v800 = vadd.f32 0.0, %v799
  %801 = vmatmul.f32.gmra.mxu0 %v738
  %v802 = vpop.f32.mrf.mxu0
  %v803 = vadd.f32 0.0, %v802
  %804 = vmatmul.f32.gmra.mxu0 %v741
  %v805 = vpop.f32.mrf.mxu0
  %v806 = vadd.f32 0.0, %v805
  %807 = vmatmul.f32.gmra.mxu0 %v744
  %v808 = vpop.f32.mrf.mxu0
  %v809 = vadd.f32 0.0, %v808
  %810 = vmatmul.f32.gmra.mxu0 %v747
  %v811 = vpop.f32.mrf.mxu0
  %v812 = vadd.f32 0.0, %v811
  %813 = vmatmul.f32.gmra.mxu0 %v750
  %v814 = vpop.f32.mrf.mxu0
  %v815 = vadd.f32 0.0, %v814
  %816 = vmatmul.f32.gmra.mxu0 %v753
  %v817 = vpop.f32.mrf.mxu0
  %v818 = vadd.f32 0.0, %v817
  %819 = vmatmul.f32.gmra.mxu0 %v756
  %v820 = vpop.f32.mrf.mxu0
  %v821 = vadd.f32 0.0, %v820
  %822 = vmatmul.f32.gmra.mxu0 %v759
  %v823 = vpop.f32.mrf.mxu0
  %v824 = vadd.f32 0.0, %v823
  %825 = vmatmul.f32.gmra.mxu0 %v762
  %v826 = vpop.f32.mrf.mxu0
  %v827 = vadd.f32 0.0, %v826
  %828 = vmatmul.f32.gmra.mxu0 %v765
  %v829 = vpop.f32.mrf.mxu0
  %v830 = vadd.f32 0.0, %v829
  %831 = vmatmul.f32.gmra.mxu0 %v768
  %v832 = vpop.f32.mrf.mxu0
  %v833 = vadd.f32 0.0, %v832
  %834 = vmatmul.f32.gmra.mxu0 %v771
  %v835 = vpop.f32.mrf.mxu0
  %v836 = vadd.f32 0.0, %v835
  %837 = vmatmul.f32.gmra.mxu0 %v774
  %v838 = vpop.f32.mrf.mxu0
  %v839 = vadd.f32 0.0, %v838
  %840 = vmatmul.f32.gmra.mxu0 %v777
  %v841 = vpop.f32.mrf.mxu0
  %v842 = vadd.f32 0.0, %v841
  %843 = vmatmul.f32.gmra.mxu0 %v780
  %v844 = vpop.f32.mrf.mxu0
  %v845 = vadd.f32 0.0, %v844
  %846 = vdwg.mxu0
  %v847 = vperm.slane %v331, 0
  %v848 = vmul.f32 %v847, 0.0
  %v849 = vmul.f32 %v800, %v848
  %v850 = vmul.f32 %v803, %v848
  %v851 = vadd.f32 %v849, %v850
  %v852 = vrot.slane %v851, 4
  %v853 = vadd.f32 %v851, %v852
  %v854 = vrot.slane %v853, 2
  %v855 = vadd.f32 %v853, %v854
  %v856 = vrot.slane %v855, 1
  %v857 = vadd.f32 %v855, %v856
  %v858 = vsub.f32 %v455, %v857
  %v859 = vmul.f32 %v858, %v351
  %v860 = vperm.slane %v859, 0
  %v861 = vmul.f32 %v800, %v860
  %v862 = vmul.f32 %v803, %v860
  %v863 = vadd.f32 %v848, %v861
  %v864 = vadd.f32 %v848, %v862
  %v865 = vperm.slane %v331, 1
  %v866 = vmul.f32 %v863, %v865
  %v867 = vmul.f32 %v864, %v865
  %v868 = vmul.f32 %v806, %v866
  %v869 = vmul.f32 %v809, %v867
  %v870 = vadd.f32 %v868, %v869
  %v871 = vrot.slane %v870, 4
  %v872 = vadd.f32 %v870, %v871
  %v873 = vrot.slane %v872, 2
  %v874 = vadd.f32 %v872, %v873
  %v875 = vrot.slane %v874, 1
  %v876 = vadd.f32 %v874, %v875
  %v877 = vsub.f32 %v455, %v876
  %v878 = vmul.f32 %v877, %v351
  %v879 = vperm.slane %v878, 1
  %v880 = vmul.f32 %v806, %v879
  %v881 = vmul.f32 %v809, %v879
  %v882 = vadd.f32 %v866, %v880
  %v883 = vadd.f32 %v867, %v881
  %v884 = vperm.slane %v331, 2
  %v885 = vmul.f32 %v882, %v884
  %v886 = vmul.f32 %v883, %v884
  %v887 = vmul.f32 %v812, %v885
  %v888 = vmul.f32 %v815, %v886
  %v889 = vadd.f32 %v887, %v888
  %v890 = vrot.slane %v889, 4
  %v891 = vadd.f32 %v889, %v890
  %v892 = vrot.slane %v891, 2
  %v893 = vadd.f32 %v891, %v892
  %v894 = vrot.slane %v893, 1
  %v895 = vadd.f32 %v893, %v894
  %v896 = vsub.f32 %v455, %v895
  %v897 = vmul.f32 %v896, %v351
  %v898 = vperm.slane %v897, 2
  %v899 = vmul.f32 %v812, %v898
  %v900 = vmul.f32 %v815, %v898
  %v901 = vadd.f32 %v885, %v899
  %v902 = vadd.f32 %v886, %v900
  %v903 = vperm.slane %v331, 3
  %v904 = vmul.f32 %v901, %v903
  %v905 = vmul.f32 %v902, %v903
  %v906 = vmul.f32 %v818, %v904
  %v907 = vmul.f32 %v821, %v905
  %v908 = vadd.f32 %v906, %v907
  %v909 = vrot.slane %v908, 4
  %v910 = vadd.f32 %v908, %v909
  %v911 = vrot.slane %v910, 2
  %v912 = vadd.f32 %v910, %v911
  %v913 = vrot.slane %v912, 1
  %v914 = vadd.f32 %v912, %v913
  %v915 = vsub.f32 %v455, %v914
  %v916 = vmul.f32 %v915, %v351
  %v917 = vperm.slane %v916, 3
  %v918 = vmul.f32 %v818, %v917
  %v919 = vmul.f32 %v821, %v917
  %v920 = vadd.f32 %v904, %v918
  %v921 = vadd.f32 %v905, %v919
  %v922 = vperm.slane %v331, 4
  %v923 = vmul.f32 %v920, %v922
  %v924 = vmul.f32 %v921, %v922
  %v925 = vmul.f32 %v824, %v923
  %v926 = vmul.f32 %v827, %v924
  %v927 = vadd.f32 %v925, %v926
  %v928 = vrot.slane %v927, 4
  %v929 = vadd.f32 %v927, %v928
  %v930 = vrot.slane %v929, 2
  %v931 = vadd.f32 %v929, %v930
  %v932 = vrot.slane %v931, 1
  %v933 = vadd.f32 %v931, %v932
  %v934 = vsub.f32 %v455, %v933
  %v935 = vmul.f32 %v934, %v351
  %v936 = vperm.slane %v935, 4
  %v937 = vmul.f32 %v824, %v936
  %v938 = vmul.f32 %v827, %v936
  %v939 = vadd.f32 %v923, %v937
  %v940 = vadd.f32 %v924, %v938
  %v941 = vperm.slane %v331, 5
  %v942 = vmul.f32 %v939, %v941
  %v943 = vmul.f32 %v940, %v941
  %v944 = vmul.f32 %v830, %v942
  %v945 = vmul.f32 %v833, %v943
  %v946 = vadd.f32 %v944, %v945
  %v947 = vrot.slane %v946, 4
  %v948 = vadd.f32 %v946, %v947
  %v949 = vrot.slane %v948, 2
  %v950 = vadd.f32 %v948, %v949
  %v951 = vrot.slane %v950, 1
  %v952 = vadd.f32 %v950, %v951
  %v953 = vsub.f32 %v455, %v952
  %v954 = vmul.f32 %v953, %v351
  %v955 = vperm.slane %v954, 5
  %v956 = vmul.f32 %v830, %v955
  %v957 = vmul.f32 %v833, %v955
  %v958 = vadd.f32 %v942, %v956
  %v959 = vadd.f32 %v943, %v957
  %v960 = vperm.slane %v331, 6
  %v961 = vmul.f32 %v958, %v960
  %v962 = vmul.f32 %v959, %v960
  %v963 = vmul.f32 %v836, %v961
  %v964 = vmul.f32 %v839, %v962
  %v965 = vadd.f32 %v963, %v964
  %v966 = vrot.slane %v965, 4
  %v967 = vadd.f32 %v965, %v966
  %v968 = vrot.slane %v967, 2
  %v969 = vadd.f32 %v967, %v968
  %v970 = vrot.slane %v969, 1
  %v971 = vadd.f32 %v969, %v970
  %v972 = vsub.f32 %v455, %v971
  %v973 = vmul.f32 %v972, %v351
  %v974 = vperm.slane %v973, 6
  %v975 = vmul.f32 %v836, %v974
  %v976 = vmul.f32 %v839, %v974
  %v977 = vadd.f32 %v961, %v975
  %v978 = vadd.f32 %v962, %v976
  %v979 = vperm.slane %v331, 7
  %v980 = vmul.f32 %v977, %v979
  %v981 = vmul.f32 %v978, %v979
  %v982 = vmul.f32 %v842, %v980
  %v983 = vmul.f32 %v845, %v981
  %v984 = vadd.f32 %v982, %v983
  %v985 = vrot.slane %v984, 4
  %v986 = vadd.f32 %v984, %v985
  %v987 = vrot.slane %v986, 2
  %v988 = vadd.f32 %v986, %v987
  %v989 = vrot.slane %v988, 1
  %v990 = vadd.f32 %v988, %v989
  %v991 = vsub.f32 %v455, %v990
  %v992 = vmul.f32 %v991, %v351
  %v993 = vperm.slane %v992, 7
  %v994 = vmul.f32 %v842, %v993
  %v995 = vmul.f32 %v845, %v993
  %v996 = vadd.f32 %v980, %v994
  %v997 = vadd.f32 %v981, %v995
  %998 = vmatpush.msra.mxu0 0.0
  %999 = vmatpush.msra.mxu0 0.0
  %1000 = vmatpush.msra.mxu0 0.0
  %1001 = vmatpush.msra.mxu0 0.0
  %1002 = vmatpush.msra.mxu0 0.0
  %1003 = vmatpush.msra.mxu0 0.0
  %1004 = vmatpush.msra.mxu0 0.0
  %1005 = vmatpush.msra.mxu0 0.0
  %1006 = vmatpush.msra.mxu0 0.0
  %1007 = vmatpush.msra.mxu0 0.0
  %1008 = vmatpush.msra.mxu0 0.0
  %1009 = vmatpush.msra.mxu0 0.0
  %1010 = vmatpush.msra.mxu0 0.0
  %1011 = vmatpush.msra.mxu0 0.0
  %1012 = vmatpush.msra.mxu0 0.0
  %1013 = vmatpush.msra.mxu0 %v544
  %1014 = vmatmul.f32.gmra.mxu0 %v621
  %v1015 = vpop.f32.mrf.mxu0
  %v1016 = vadd.f32 0.0, %v1015
  %1017 = vmatmul.f32.gmra.mxu0 %v623
  %v1018 = vpop.f32.mrf.mxu0
  %v1019 = vadd.f32 0.0, %v1018
  %1020 = vmatmul.f32.gmra.mxu0 %v625
  %v1021 = vpop.f32.mrf.mxu0
  %v1022 = vadd.f32 0.0, %v1021
  %1023 = vmatmul.f32.gmra.mxu0 %v627
  %v1024 = vpop.f32.mrf.mxu0
  %v1025 = vadd.f32 0.0, %v1024
  %1026 = vmatmul.f32.gmra.mxu0 %v629
  %v1027 = vpop.f32.mrf.mxu0
  %v1028 = vadd.f32 0.0, %v1027
  %1029 = vmatmul.f32.gmra.mxu0 %v631
  %v1030 = vpop.f32.mrf.mxu0
  %v1031 = vadd.f32 0.0, %v1030
  %1032 = vmatmul.f32.gmra.mxu0 %v633
  %v1033 = vpop.f32.mrf.mxu0
  %v1034 = vadd.f32 0.0, %v1033
  %1035 = vmatmul.f32.gmra.mxu0 %v635
  %v1036 = vpop.f32.mrf.mxu0
  %v1037 = vadd.f32 0.0, %v1036
  %1038 = vmatmul.f32.gmra.mxu0 %v637
  %v1039 = vpop.f32.mrf.mxu0
  %v1040 = vadd.f32 0.0, %v1039
  %1041 = vmatmul.f32.gmra.mxu0 %v639
  %v1042 = vpop.f32.mrf.mxu0
  %v1043 = vadd.f32 0.0, %v1042
  %1044 = vmatmul.f32.gmra.mxu0 %v641
  %v1045 = vpop.f32.mrf.mxu0
  %v1046 = vadd.f32 0.0, %v1045
  %1047 = vmatmul.f32.gmra.mxu0 %v643
  %v1048 = vpop.f32.mrf.mxu0
  %v1049 = vadd.f32 0.0, %v1048
  %1050 = vmatmul.f32.gmra.mxu0 %v645
  %v1051 = vpop.f32.mrf.mxu0
  %v1052 = vadd.f32 0.0, %v1051
  %1053 = vmatmul.f32.gmra.mxu0 %v647
  %v1054 = vpop.f32.mrf.mxu0
  %v1055 = vadd.f32 0.0, %v1054
  %1056 = vmatmul.f32.gmra.mxu0 %v649
  %v1057 = vpop.f32.mrf.mxu0
  %v1058 = vadd.f32 0.0, %v1057
  %1059 = vmatmul.f32.gmra.mxu0 %v651
  %v1060 = vpop.f32.mrf.mxu0
  %v1061 = vadd.f32 0.0, %v1060
  %1062 = vdwg.mxu0
  %v1063 = vmul.f32 %v1016, %v545
  %v1064 = vmul.f32 %v1019, %v546
  %v1065 = vmul.f32 %v1022, %v547
  %v1066 = vmul.f32 %v1025, %v548
  %v1067 = vmul.f32 %v1028, %v549
  %v1068 = vmul.f32 %v1031, %v550
  %v1069 = vmul.f32 %v1034, %v551
  %v1070 = vmul.f32 %v1037, %v552
  %v1071 = vmul.f32 %v1040, %v553
  %v1072 = vmul.f32 %v1043, %v554
  %v1073 = vmul.f32 %v1046, %v555
  %v1074 = vmul.f32 %v1049, %v556
  %v1075 = vmul.f32 %v1052, %v557
  %v1076 = vmul.f32 %v1055, %v558
  %v1077 = vmul.f32 %v1058, %v559
  %v1078 = vmul.f32 %v1061, %v560
  %v1080 = vsel %vm50, %v1063, 0
  %v1083 = vsel %vm50, %v1064, 0
  %v1086 = vsel %vm50, %v1065, 0
  %v1089 = vsel %vm50, %v1066, 0
  %v1092 = vsel %vm50, %v1067, 0
  %v1095 = vsel %vm50, %v1068, 0
  %v1098 = vsel %vm50, %v1069, 0
  %v1101 = vsel %vm50, %v1070, 0
  %v1104 = vsel %vm50, %v1071, 0
  %v1107 = vsel %vm50, %v1072, 0
  %v1110 = vsel %vm50, %v1073, 0
  %v1113 = vsel %vm50, %v1074, 0
  %v1116 = vsel %vm50, %v1075, 0
  %v1119 = vsel %vm50, %v1076, 0
  %v1122 = vsel %vm50, %v1077, 0
  %v1125 = vsel %vm50, %v1078, 0
  %1127 = vmatpush.msra.mxu0 0.0
  %1128 = vmatpush.msra.mxu0 0.0
  %1129 = vmatpush.msra.mxu0 0.0
  %1130 = vmatpush.msra.mxu0 0.0
  %1131 = vmatpush.msra.mxu0 0.0
  %1132 = vmatpush.msra.mxu0 0.0
  %1133 = vmatpush.msra.mxu0 0.0
  %1134 = vmatpush.msra.mxu0 0.0
  %1135 = vmatpush.msra.mxu0 %v568
  %1136 = vmatpush.msra.mxu0 %v567
  %1137 = vmatpush.msra.mxu0 %v566
  %1138 = vmatpush.msra.mxu0 %v565
  %1139 = vmatpush.msra.mxu0 %v564
  %1140 = vmatpush.msra.mxu0 %v563
  %1141 = vmatpush.msra.mxu0 %v562
  %1142 = vmatpush.msra.mxu0 %v561
  %1143 = vmatmul.f32.gmra.mxu0 %v1080
  %v1144 = vpop.f32.mrf.mxu0
  %v1145 = vadd.f32 0.0, %v1144
  %1146 = vmatmul.f32.gmra.mxu0 %v1083
  %v1147 = vpop.f32.mrf.mxu0
  %v1148 = vadd.f32 0.0, %v1147
  %1149 = vmatmul.f32.gmra.mxu0 %v1086
  %v1150 = vpop.f32.mrf.mxu0
  %v1151 = vadd.f32 0.0, %v1150
  %1152 = vmatmul.f32.gmra.mxu0 %v1089
  %v1153 = vpop.f32.mrf.mxu0
  %v1154 = vadd.f32 0.0, %v1153
  %1155 = vmatmul.f32.gmra.mxu0 %v1092
  %v1156 = vpop.f32.mrf.mxu0
  %v1157 = vadd.f32 0.0, %v1156
  %1158 = vmatmul.f32.gmra.mxu0 %v1095
  %v1159 = vpop.f32.mrf.mxu0
  %v1160 = vadd.f32 0.0, %v1159
  %1161 = vmatmul.f32.gmra.mxu0 %v1098
  %v1162 = vpop.f32.mrf.mxu0
  %v1163 = vadd.f32 0.0, %v1162
  %1164 = vmatmul.f32.gmra.mxu0 %v1101
  %v1165 = vpop.f32.mrf.mxu0
  %v1166 = vadd.f32 0.0, %v1165
  %1167 = vmatmul.f32.gmra.mxu0 %v1104
  %v1168 = vpop.f32.mrf.mxu0
  %v1169 = vadd.f32 0.0, %v1168
  %1170 = vmatmul.f32.gmra.mxu0 %v1107
  %v1171 = vpop.f32.mrf.mxu0
  %v1172 = vadd.f32 0.0, %v1171
  %1173 = vmatmul.f32.gmra.mxu0 %v1110
  %v1174 = vpop.f32.mrf.mxu0
  %v1175 = vadd.f32 0.0, %v1174
  %1176 = vmatmul.f32.gmra.mxu0 %v1113
  %v1177 = vpop.f32.mrf.mxu0
  %v1178 = vadd.f32 0.0, %v1177
  %1179 = vmatmul.f32.gmra.mxu0 %v1116
  %v1180 = vpop.f32.mrf.mxu0
  %v1181 = vadd.f32 0.0, %v1180
  %1182 = vmatmul.f32.gmra.mxu0 %v1119
  %v1183 = vpop.f32.mrf.mxu0
  %v1184 = vadd.f32 0.0, %v1183
  %1185 = vmatmul.f32.gmra.mxu0 %v1122
  %v1186 = vpop.f32.mrf.mxu0
  %v1187 = vadd.f32 0.0, %v1186
  %1188 = vmatmul.f32.gmra.mxu0 %v1125
  %v1189 = vpop.f32.mrf.mxu0
  %v1190 = vadd.f32 0.0, %v1189
  %1191 = vdwg.mxu0
  %v1192 = vld [vmem:[%s3 + $0xc0] sm:$0xff]
  %v1193 = vmul.f32 %v1145, %v863
  %v1194 = vmul.f32 %v1148, %v864
  %v1195 = vmul.f32 %v1151, %v882
  %v1196 = vmul.f32 %v1154, %v883
  %v1197 = vmul.f32 %v1157, %v901
  %v1198 = vmul.f32 %v1160, %v902
  %v1199 = vmul.f32 %v1163, %v920
  %v1200 = vmul.f32 %v1166, %v921
  %v1201 = vmul.f32 %v1169, %v939
  %v1202 = vmul.f32 %v1172, %v940
  %v1203 = vmul.f32 %v1175, %v958
  %v1204 = vmul.f32 %v1178, %v959
  %v1205 = vmul.f32 %v1181, %v977
  %v1206 = vmul.f32 %v1184, %v978
  %v1207 = vmul.f32 %v1187, %v996
  %v1208 = vmul.f32 %v1190, %v997
  %1209 = vmatpush.msra.mxu0 %v1208
  %1210 = vmatpush.msra.mxu0 %v1207
  %1211 = vmatpush.msra.mxu0 %v1206
  %1212 = vmatpush.msra.mxu0 %v1205
  %1213 = vmatpush.msra.mxu0 %v1204
  %1214 = vmatpush.msra.mxu0 %v1203
  %1215 = vmatpush.msra.mxu0 %v1202
  %1216 = vmatpush.msra.mxu0 %v1201
  %1217 = vmatpush.msra.mxu0 %v1200
  %1218 = vmatpush.msra.mxu0 %v1199
  %1219 = vmatpush.msra.mxu0 %v1198
  %1220 = vmatpush.msra.mxu0 %v1197
  %1221 = vmatpush.msra.mxu0 %v1196
  %1222 = vmatpush.msra.mxu0 %v1195
  %1223 = vmatpush.msra.mxu0 %v1194
  %1224 = vmatpush.msra.mxu0 %v1193
  %1225 = vmatmul.f32.gmra.mxu0 %v1192
  %v1226 = vpop.f32.mrf.mxu0
  %v1227 = vadd.f32 0.0, %v1226
  %1228 = vdwg.mxu0
  %v1229 = vmul.f32 %v1227, %v1227
  %v1230 = vld [vmem:[%s3 + $0x148] sm:$0xff]
  %v1231 = vld [vmem:[%s3 + $0x150] sm:$0xff]
  %v1232 = vld [vmem:[%s3 + $0x158] sm:$0xff]
  %v1233 = vld [vmem:[%s3 + $0x160] sm:$0xff]
  %v1234 = vld [vmem:[%s3 + $0x168] sm:$0xff]
  %v1235 = vld [vmem:[%s3 + $0x170] sm:$0xff]
  %v1236 = vld [vmem:[%s3 + $0x178] sm:$0xff]
  %v1237 = vld [vmem:[%s3 + $0x180] sm:$0xff]
  %v1238 = vld [vmem:[%s3 + $0x188] sm:$0xff]
  %v1239 = vld [vmem:[%s3 + $0x190] sm:$0xff]
  %v1240 = vld [vmem:[%s3 + $0x198] sm:$0xff]
  %v1241 = vld [vmem:[%s3 + $0x1a0] sm:$0xff]
  %v1242 = vld [vmem:[%s3 + $0x1a8] sm:$0xff]
  %v1243 = vld [vmem:[%s3 + $0x1b0] sm:$0xff]
  %v1244 = vld [vmem:[%s3 + $0x1b8] sm:$0xff]
  %v1245 = vld [vmem:[%s3 + $0x1c0] sm:$0xff]
  %1246 = vmatpush.msra.mxu0 %v1245
  %1247 = vmatpush.msra.mxu0 %v1244
  %1248 = vmatpush.msra.mxu0 %v1243
  %1249 = vmatpush.msra.mxu0 %v1242
  %1250 = vmatpush.msra.mxu0 %v1241
  %1251 = vmatpush.msra.mxu0 %v1240
  %1252 = vmatpush.msra.mxu0 %v1239
  %1253 = vmatpush.msra.mxu0 %v1238
  %1254 = vmatpush.msra.mxu0 %v1237
  %1255 = vmatpush.msra.mxu0 %v1236
  %1256 = vmatpush.msra.mxu0 %v1235
  %1257 = vmatpush.msra.mxu0 %v1234
  %1258 = vmatpush.msra.mxu0 %v1233
  %1259 = vmatpush.msra.mxu0 %v1232
  %1260 = vmatpush.msra.mxu0 %v1231
  %1261 = vmatpush.msra.mxu0 %v1230
  %1262 = vmatmul.f32.gmra.mxu0 %v1229
  %v1263 = vpop.f32.mrf.mxu0
  %v1264 = vadd.f32 1e-05, %v1263
  %1265 = vdwg.mxu0
  %v1266 = vrsqrt.pop %v1264
  %v1267 = vmul.f32 %v1266, %v1264
  %v1268 = vmul.f32 %v1267, %v1266
  %v1269 = vmul.f32 0.5, %v1268
  %v1270 = vsub.f32 1.5, %v1269
  %v1271 = vmul.f32 %v1266, %v1270
  %vm1272 = vweird.f32 %v1264
  %vm1273 = vweird.f32 %v1266
  %vm1274 = vmor %vm1272, %vm1273
  %v1275 = vsel %vm1274, %v1266, %v1271
  %v1276 = vmul.f32 %v1227, %v1275
  %v1277 = vxor.u32 %v112, 2147483648
  %v1278 = vmul.f32 %v1277, 1.442695
  %v1279 = vpow.pop %v1278
  %v1280 = vadd.f32 %v1279, 1.0
  %v1281 = vrcp.pop %v1280
  %v1282 = vmul.f32 %v1280, %v1281
  %v1283 = vsub.f32 1.0, %v1282
  %v1284 = vmul.f32 %v1281, %v1283
  %v1285 = vadd.f32 %v1281, %v1284
  %vm1286 = vweird.f32 %v1280
  %vm1287 = vweird.f32 %v1281
  %vm1288 = vmor %vm1286, %vm1287
  %v1289 = vsel %vm1288, %v1281, %v1285
  %v1290 = vand.u32 2147483647, %v1280
  %vm1291 = vcmp.eq.f32.partialorder %v1290, 8.507059e+37
  %v1292 = vand.u32 %v1280, 2147483648
  %v1293 = vor.u32 1.1754944e-38, %v1292
  %v1294 = vsel %vm1291, %v1293, %v1289
  %v1295 = vmul.f32 1.0, %v1294
  %v1296 = vmul.f32 %v112, %v1295
  %v1297 = vmul.f32 %v1276, %v1296
  %v1298 = vld [vmem:[%s3 + $0x1c8] sm:$0xff]
  %v1299 = vld [vmem:[%s3 + $0x1d0] sm:$0xff]
  %v1300 = vld [vmem:[%s3 + $0x1d8] sm:$0xff]
  %v1301 = vld [vmem:[%s3 + $0x1e0] sm:$0xff]
  %v1302 = vld [vmem:[%s3 + $0x1e8] sm:$0xff]
  %v1303 = vld [vmem:[%s3 + $0x1f0] sm:$0xff]
  %v1304 = vld [vmem:[%s3 + $0x1f8] sm:$0xff]
  %v1305 = vld [vmem:[%s3 + $0x200] sm:$0xff]
  %v1306 = vld [vmem:[%s3 + $0x208] sm:$0xff]
  %v1307 = vld [vmem:[%s3 + $0x210] sm:$0xff]
  %v1308 = vld [vmem:[%s3 + $0x218] sm:$0xff]
  %v1309 = vld [vmem:[%s3 + $0x220] sm:$0xff]
  %v1310 = vld [vmem:[%s3 + $0x228] sm:$0xff]
  %v1311 = vld [vmem:[%s3 + $0x230] sm:$0xff]
  %v1312 = vld [vmem:[%s3 + $0x238] sm:$0xff]
  %v1313 = vld [vmem:[%s3 + $0x240] sm:$0xff]
  %1314 = vmatpush.msra.mxu0 %v1313
  %1315 = vmatpush.msra.mxu0 %v1312
  %1316 = vmatpush.msra.mxu0 %v1311
  %1317 = vmatpush.msra.mxu0 %v1310
  %1318 = vmatpush.msra.mxu0 %v1309
  %1319 = vmatpush.msra.mxu0 %v1308
  %1320 = vmatpush.msra.mxu0 %v1307
  %1321 = vmatpush.msra.mxu0 %v1306
  %1322 = vmatpush.msra.mxu0 %v1305
  %1323 = vmatpush.msra.mxu0 %v1304
  %1324 = vmatpush.msra.mxu0 %v1303
  %1325 = vmatpush.msra.mxu0 %v1302
  %1326 = vmatpush.msra.mxu0 %v1301
  %1327 = vmatpush.msra.mxu0 %v1300
  %1328 = vmatpush.msra.mxu0 %v1299
  %1329 = vmatpush.msra.mxu0 %v1298
  %1330 = vmatmul.f32.gmra.mxu0 %v1297
  %v1331 = vpop.f32.mrf.mxu0
  %v1332 = vadd.f32 0.0, %v1331
  %1333 = vdwg.mxu0
  %1334 = vst [vmem:[%s4] sm:$0xff] %v1332
  // Predicated region
  $region18: #{gated_delta_net_forward.1} parent=0 // pred_check
    _
  $region19: #{gated_delta_net_forward.1} parent=0 // pred_check_branch
    %1336 = sbr.rel (0) target = $region21
  $region20: #{gated_delta_net_forward.1} parent=0 // pred_region
    _
  $region21: #{gated_delta_net_forward.1} parent=0 // pred_fallthru
    _
  // Predicated region
  $region22: #{gated_delta_net_forward.1} parent=0 // pred_check
    _
  $region23: #{gated_delta_net_forward.1} parent=0 // pred_check_branch
    %1338 = sbr.rel (0) target = $region25
  $region24: #{gated_delta_net_forward.1} parent=0 // pred_region
    _
  $region25: #{gated_delta_net_forward.1} parent=0 // pred_fallthru
    _

</llo_original>
